<compile_context>
chip_gen: v7x
topology: tpu7x:2x2x1
jax: 0.10.0
libtpu: 0.0.40
codegen_flags: <defaults>
</compile_context>

<pallas_src>
import jax
import jax.numpy as jnp
from jax.experimental import pallas as pl
from jax.experimental.pallas import tpu as pltpu


def _round_up(n, m):
    return ((n + m - 1) // m) * m


# ----------------------------- Pallas kernel ------------------------------

def _net_dis_kernel(x_ref, w1_ref, b1_ref, w2_ref, b2_ref, o_ref):
    # x: [TN, 320], w1: [320, 50], b1: [1, 50], w2: [1, 50], b2: [1, 1]
    # o: [1, TN]  (lane-dense row per grid step)
    h = jnp.dot(
        x_ref[...], w1_ref[...],
        preferred_element_type=jnp.float32,
        precision=jax.lax.Precision.HIGHEST,
    )
    h = jnp.maximum(h + b1_ref[...], 0.0)
    # TODO(synk): F.dropout is identity in eval mode; training-mode dropout
    # (Bernoulli mask + 1/(1-p) scaling via pltpu.prng_*) is not implemented.
    # fc2 (50 -> 1) as VPU multiply + lane reduction (avoids a 1-column MXU
    # matmul) and produce the output directly as a lane-dense (1, TN) row.
    y = jnp.sum(h * w2_ref[...], axis=-1)[None, :] + b2_ref[...]
    o_ref[...] = jax.nn.sigmoid(y)


def net_dis_forward(x, params, *, tn=2048):
    """x: [N, 320] float32 -> [N, 1] float32 (sigmoid outputs)."""
    x = x.astype(jnp.float32)
    N, D = x.shape
    H = params["w1"].shape[1]  # 50
    assert D == params["w1"].shape[0]

    # Pad rows only to a sublane multiple (8); the last grid block may be
    # ragged (pl.cdiv grid) so we never add tile-sized padding traffic.
    n_pad = _round_up(max(N, 1), 8)

    if n_pad > tn or n_pad >= 256:
        # Multi-step grid: the tile must be a multiple of 128 so the
        # lane-dense output block is legal; cap it so there are >=2 steps
        # (keeps both v7x TensorCores busy; harmless on v5e/v6e).
        tn_eff = max(128, min(_round_up(tn, 128),
                              _round_up(pl.cdiv(n_pad, 2), 128)))
    else:
        # Single block: block shape equals the full (padded) array dims.
        tn_eff = n_pad
    grid = pl.cdiv(n_pad, tn_eff)

    if n_pad != N:
        x = jnp.pad(x, ((0, n_pad - N), (0, 0)))

    w1 = params["w1"].astype(jnp.float32)                     # [320, 50]
    b1 = params["b1"].reshape(1, H).astype(jnp.float32)       # [1, 50]
    w2 = params["w2"].reshape(1, H).astype(jnp.float32)       # [1, 50] row
    b2 = params["b2"].reshape(1, 1).astype(jnp.float32)       # [1, 1]

    out = pl.pallas_call(
        _net_dis_kernel,
        # Lane-dense output slab: one (1, tn_eff) row per grid step.
        out_shape=jax.ShapeDtypeStruct((1, grid * tn_eff), jnp.float32),
        grid_spec=pltpu.PrefetchScalarGridSpec(
            num_scalar_prefetch=0,
            grid=(grid,),
            in_specs=[
                pl.BlockSpec((tn_eff, D), lambda i: (i, 0)),  # batch tile
                pl.BlockSpec((D, H), lambda i: (0, 0)),       # w1 (resident)
                pl.BlockSpec((1, H), lambda i: (0, 0)),       # b1
                pl.BlockSpec((1, H), lambda i: (0, 0)),       # w2 row
                pl.BlockSpec((1, 1), lambda i: (0, 0)),       # b2
            ],
            out_specs=pl.BlockSpec((1, tn_eff), lambda i: (0, i)),
        ),
        compiler_params=pltpu.CompilerParams(
            dimension_semantics=("parallel",),
            vmem_limit_bytes=32 * 1024 * 1024,  # ample; ~6 MiB actually needed
        ),
    )(x, w1, b1, w2, b2)

    return out.reshape(-1)[:N].reshape(N, 1)


# ------------------------------ Param init --------------------------------

def init_params(key):
    # PyTorch nn.Linear default init: U(-1/sqrt(fan_in), 1/sqrt(fan_in)).
    k1, k2, k3, k4 = jax.random.split(key, 4)
    lim1 = 1.0 / jnp.sqrt(320.0)
    lim2 = 1.0 / jnp.sqrt(50.0)
    # Stored [in, out] (transposed from PyTorch's [out, in]).
    w1 = jax.random.uniform(k1, (320, 50), jnp.float32, -lim1, lim1)
    b1 = jax.random.uniform(k2, (50,), jnp.float32, -lim1, lim1)
    w2 = jax.random.uniform(k3, (50, 1), jnp.float32, -lim2, lim2)
    b2 = jax.random.uniform(k4, (1,), jnp.float32, -lim2, lim2)
    return {"w1": w1, "b1": b1, "w2": w2, "b2": b2}


if __name__ == "__main__":
    key = jax.random.PRNGKey(0)
    pkey, xkey, xkey2 = jax.random.split(key, 3)
    params = init_params(pkey)

    def reference(xr):
        h = jnp.maximum(
            jnp.dot(xr, params["w1"], precision=jax.lax.Precision.HIGHEST)
            + params["b1"], 0.0)
        y = (jnp.dot(h, params["w2"], precision=jax.lax.Precision.HIGHEST)
             + params["b2"].reshape(1, 1))
        return jax.nn.sigmoid(y)

    # Primary small test (batch=2): single-block path.
    x = jax.random.normal(xkey, (2, 320), dtype=jnp.float32)
    out = jax.block_until_ready(net_dis_forward(x, params))
    assert out.shape == (2, 1), out.shape
    assert out.dtype == jnp.float32
    assert bool(jnp.all((out >= 0.0) & (out <= 1.0)))
    assert jnp.allclose(out, reference(x), atol=1e-5, rtol=1e-5), "mismatch (N=2)"

    # Second test (batch=300): multi-step grid, ragged last block, lane-dense output.
    x2 = jax.random.normal(xkey2, (300, 320), dtype=jnp.float32)
    out2 = jax.block_until_ready(net_dis_forward(x2, params))
    assert out2.shape == (300, 1), out2.shape
    assert bool(jnp.all((out2 >= 0.0) & (out2 <= 1.0)))
    assert jnp.allclose(out2, reference(x2), atol=1e-5, rtol=1e-5), "mismatch (N=300)"

    print("KERNEL_OK")
</pallas_src>

<mosaic_0001>
module attributes {stable_mosaic.version = 11 : i64} {
  func.func @_net_dis_kernel(%arg0: i32, %arg1: memref<8x320xf32, #tpu.memory_space<vmem>>, %arg2: memref<320x50xf32, #tpu.memory_space<vmem>>, %arg3: memref<1x50xf32, #tpu.memory_space<vmem>>, %arg4: memref<1x50xf32, #tpu.memory_space<vmem>>, %arg5: memref<1x1xf32, #tpu.memory_space<vmem>>, %arg6: memref<1x8xf32, #tpu.memory_space<vmem>>) attributes {dimension_semantics = [#tpu.dimension_semantics<parallel>], iteration_bounds = array<i64: 1>, scalar_prefetch = 0 : i64, scratch_operands = 0 : i64, tpu.core_type = #tpu.core_type<tc>, window_params = [{transform_indices = @transform_0, window_bounds = array<i64: 8, 320>}, {pipeline_mode = #tpu.pipeline_mode<synchronous>, transform_indices = @transform_1, window_bounds = array<i64: 320, 50>}, {pipeline_mode = #tpu.pipeline_mode<synchronous>, transform_indices = @transform_2, window_bounds = array<i64: 1, 50>}, {pipeline_mode = #tpu.pipeline_mode<synchronous>, transform_indices = @transform_3, window_bounds = array<i64: 1, 50>}, {pipeline_mode = #tpu.pipeline_mode<synchronous>, transform_indices = @transform_4, window_bounds = array<i64: 1, 1>}, {transform_indices = @transform_5, window_bounds = array<i64: 1, 8>}]} {
    %c0 = arith.constant 0 : index
    %c0_0 = arith.constant 0 : index
    %0 = vector.load %arg1[%c0, %c0_0] : memref<8x320xf32, #tpu.memory_space<vmem>>, vector<8x320xf32>
    %c0_1 = arith.constant 0 : index
    %c0_2 = arith.constant 0 : index
    %1 = vector.load %arg2[%c0_1, %c0_2] : memref<320x50xf32, #tpu.memory_space<vmem>>, vector<320x50xf32>
    %cst = arith.constant dense<0.000000e+00> : vector<8x50xf32>
    %2 = tpu.matmul %0, %1, %cst {dimension_numbers = #tpu.dot_dimension_numbers<[1], [0], [0], [1], [0, 0, 1, 1], [], []>, precision = #tpu.contract_precision<fp32>} : vector<8x320xf32>, vector<320x50xf32>, vector<8x50xf32> -> vector<8x50xf32>
    %c0_3 = arith.constant 0 : index
    %c0_4 = arith.constant 0 : index
    %3 = vector.load %arg3[%c0_3, %c0_4] : memref<1x50xf32, #tpu.memory_space<vmem>>, vector<1x50xf32>
    %4 = vector.broadcast %3 : vector<1x50xf32> to vector<8x50xf32>
    %5 = arith.addf %2, %4 : vector<8x50xf32>
    %cst_5 = arith.constant 0.000000e+00 : f32
    %6 = vector.broadcast %cst_5 : f32 to vector<8x50xf32>
    %7 = arith.maximumf %5, %6 : vector<8x50xf32>
    %c0_6 = arith.constant 0 : index
    %c0_7 = arith.constant 0 : index
    %8 = vector.load %arg4[%c0_6, %c0_7] : memref<1x50xf32, #tpu.memory_space<vmem>>, vector<1x50xf32>
    %9 = vector.broadcast %8 : vector<1x50xf32> to vector<8x50xf32>
    %10 = arith.mulf %7, %9 : vector<8x50xf32>
    %cst_8 = arith.constant dense<0.000000e+00> : vector<8xf32>
    %11 = vector.multi_reduction <add>, %10, %cst_8 [1] : vector<8x50xf32> to vector<8xf32>
    %12 = vector.shape_cast %11 : vector<8xf32> to vector<1x8xf32>
    %c0_9 = arith.constant 0 : index
    %c0_10 = arith.constant 0 : index
    %13 = vector.load %arg5[%c0_9, %c0_10] : memref<1x1xf32, #tpu.memory_space<vmem>>, vector<1x1xf32>
    %14 = vector.broadcast %13 : vector<1x1xf32> to vector<1x8xf32>
    %15 = arith.addf %12, %14 : vector<1x8xf32>
    %16 = arith.negf %15 : vector<1x8xf32>
    %17 = math.exp %16 : vector<1x8xf32>
    %cst_11 = arith.constant 1.000000e+00 : f32
    %18 = vector.broadcast %cst_11 : f32 to vector<1x8xf32>
    %19 = arith.addf %18, %17 : vector<1x8xf32>
    %20 = arith.divf %18, %19 : vector<1x8xf32>
    %c0_12 = arith.constant 0 : index
    %c0_13 = arith.constant 0 : index
    %21 = vector.load %arg6[%c0_12, %c0_13] : memref<1x8xf32, #tpu.memory_space<vmem>>, vector<1x8xf32>
    tpu.vector_store %arg6[%c0_12, %c0_13], %20 {strides = array<i32>} : memref<1x8xf32, #tpu.memory_space<vmem>>, vector<1x8xf32>,
    return
  }
  func.func @transform_0(%arg0: i32) -> (i32, i32) {
    %c0_i32 = arith.constant 0 : i32
    %c0_i32_0 = arith.constant 0 : i32
    return %arg0, %c0_i32 : i32, i32
  }
  func.func @transform_1(%arg0: i32) -> (i32, i32) {
    %c0_i32 = arith.constant 0 : i32
    %c0_i32_0 = arith.constant 0 : i32
    %c0_i32_1 = arith.constant 0 : i32
    return %c0_i32, %c0_i32_0 : i32, i32
  }
  func.func @transform_2(%arg0: i32) -> (i32, i32) {
    %c0_i32 = arith.constant 0 : i32
    %c0_i32_0 = arith.constant 0 : i32
    %c0_i32_1 = arith.constant 0 : i32
    return %c0_i32, %c0_i32_0 : i32, i32
  }
  func.func @transform_3(%arg0: i32) -> (i32, i32) {
    %c0_i32 = arith.constant 0 : i32
    %c0_i32_0 = arith.constant 0 : i32
    %c0_i32_1 = arith.constant 0 : i32
    return %c0_i32, %c0_i32_0 : i32, i32
  }
  func.func @transform_4(%arg0: i32) -> (i32, i32) {
    %c0_i32 = arith.constant 0 : i32
    %c0_i32_0 = arith.constant 0 : i32
    %c0_i32_1 = arith.constant 0 : i32
    return %c0_i32, %c0_i32_0 : i32, i32
  }
  func.func @transform_5(%arg0: i32) -> (i32, i32) {
    %c0_i32 = arith.constant 0 : i32
    %c0_i32_0 = arith.constant 0 : i32
    return %c0_i32, %arg0 : i32, i32
  }
}

</mosaic_0001>

<llo_original>
// kernel: tpu_custom_call.1
$region0: #{tpu_custom_call.1}
  #allocation0 [shape = 'u32[]', space=smem, size = 0x4, offset = 0x4, fixed_abs, tag = 'smem constant byte address 0x4 - core index']
  #allocation1 [shape = 'u32[144,128]{1,0:T(1,128)}', space=vmem, size = 0x12000, scoped, tag = 'internal scratch']
  #allocation2 [shape = 'f32[1,1]{1,0:T(1,128)S(1)}', space=vmem, size = 0x200, scoped, tag = 'scoped memory for tpu_custom_call.1']
  %s0 = inlined_call_operand.vmem [shape: f32[8,320], index: 0, kind: input, shape index: {}]
  %s1 = inlined_call_operand.vmem [shape: f32[320,50], index: 1, kind: input, shape index: {}]
  %s2 = inlined_call_operand.vmem [shape: f32[1,50], index: 2, kind: input, shape index: {}]
  %s3 = inlined_call_operand.vmem [shape: f32[1,50], index: 3, kind: input, shape index: {}]
  %s4 = inlined_call_operand.<no memory space> [shape: f32[1,1], index: 4, kind: input, shape index: {}]
  %s5 = inlined_call_operand.hbm [shape: f32[1,8], index: 5, kind: output, shape index: {}]
  %s6 = sld [smem:[#allocation0]]
  $region30: #{tpu_custom_call.1} parent=0
    _
  %s8 = ssub.s32 1, %s6
  %s9 = scalar_select 0, %s8, %s6
  %v10 = vstv %s4
  %11 = vst [vmem:[#allocation2] sm:$0x1] %v10
  $region1: #{tpu_custom_call.1} parent=0
    #allocation3 [shape = 'u8[512]{0}', space=vmem, size = 0x400, scoped, tag = 'output window, operand 0, single buffered']
    #allocation4 [shape = 's32[1]{0}', space=sflag, size = 0x4, scoped, tag = 'scoped memory for tpu_custom_call.1']
    %12 = vsyncpa [#allocation4], 0
    // Predicated region
    $region2: #{tpu_custom_call.1} parent=1 // pred_check
      _
    $region3: #{tpu_custom_call.1} parent=1 // pred_check_branch
      %14 = sbr.rel (0) target = $region5
    $region4: #{tpu_custom_call.1} parent=1 // pred_region
      _
    $region5: #{tpu_custom_call.1} parent=1 // pred_fallthru
      _
    // Predicated region
    $region6: #{tpu_custom_call.1} parent=1 // pred_check
      _
    $region7: #{tpu_custom_call.1} parent=1 // pred_check_branch
      %16 = sbr.rel (0) target = $region9
    $region8: #{tpu_custom_call.1} parent=1 // pred_region
      _
    $region9: #{tpu_custom_call.1} parent=1 // pred_fallthru
      _
    // Predicated region
    $region10: #{tpu_custom_call.1} parent=1 // pred_check
      _
    $region11: #{tpu_custom_call.1} parent=1 // pred_check_branch
      %18 = sbr.rel (0) target = $region13
    $region12: #{tpu_custom_call.1} parent=1 // pred_region
      _
    $region13: #{tpu_custom_call.1} parent=1 // pred_fallthru
      _
    // Predicated region
    $region14: #{tpu_custom_call.1} parent=1 // pred_check
      _
    $region15: #{tpu_custom_call.1} parent=1 // pred_check_branch
      %20 = sbr.rel (0) target = $region17
    $region16: #{tpu_custom_call.1} parent=1 // pred_region
      _
    $region17: #{tpu_custom_call.1} parent=1 // pred_fallthru
      _
    // Predicated region
    $region18: #{tpu_custom_call.1} parent=1 // pred_check
      _
    $region19: #{tpu_custom_call.1} parent=1 // pred_check_branch
      %22 = sbr.rel (0) target = $region21
    $region20: #{tpu_custom_call.1} parent=1 // pred_region
      _
    $region21: #{tpu_custom_call.1} parent=1 // pred_fallthru
      _
    %v23 = vld [vmem:[%s0] sm:$0xff]
    %v24 = vld [vmem:[%s0 + $0x8] sm:$0xff]
    %v25 = vld [vmem:[%s0 + $0x10] sm:$0xff]
    %v26 = vld [vmem:[%s1] sm:$0xff]
    %v27 = vld [vmem:[%s1 + $0x8] sm:$0xff]
    %v28 = vld [vmem:[%s1 + $0x10] sm:$0xff]
    %v29 = vld [vmem:[%s1 + $0x18] sm:$0xff]
    %v30 = vld [vmem:[%s1 + $0x20] sm:$0xff]
    %v31 = vld [vmem:[%s1 + $0x28] sm:$0xff]
    %v32 = vld [vmem:[%s1 + $0x30] sm:$0xff]
    %v33 = vld [vmem:[%s1 + $0x38] sm:$0xff]
    %v34 = vld [vmem:[%s1 + $0x40] sm:$0xff]
    %v35 = vld [vmem:[%s1 + $0x48] sm:$0xff]
    %v36 = vld [vmem:[%s1 + $0x50] sm:$0xff]
    %v37 = vld [vmem:[%s1 + $0x58] sm:$0xff]
    %v38 = vld [vmem:[%s1 + $0x60] sm:$0xff]
    %v39 = vld [vmem:[%s1 + $0x68] sm:$0xff]
    %v40 = vld [vmem:[%s1 + $0x70] sm:$0xff]
    %v41 = vld [vmem:[%s1 + $0x78] sm:$0xff]
    %v42 = vld [vmem:[%s1 + $0x80] sm:$0xff]
    %v43 = vld [vmem:[%s1 + $0x88] sm:$0xff]
    %v44 = vld [vmem:[%s1 + $0x90] sm:$0xff]
    %v45 = vld [vmem:[%s1 + $0x98] sm:$0xff]
    %v46 = vld [vmem:[%s1 + $0xa0] sm:$0xff]
    %v47 = vld [vmem:[%s1 + $0xa8] sm:$0xff]
    %v48 = vld [vmem:[%s1 + $0xb0] sm:$0xff]
    %v49 = vld [vmem:[%s1 + $0xb8] sm:$0xff]
    %v50 = vld [vmem:[%s1 + $0xc0] sm:$0xff]
    %v51 = vld [vmem:[%s1 + $0xc8] sm:$0xff]
    %v52 = vld [vmem:[%s1 + $0xd0] sm:$0xff]
    %v53 = vld [vmem:[%s1 + $0xd8] sm:$0xff]
    %v54 = vld [vmem:[%s1 + $0xe0] sm:$0xff]
    %v55 = vld [vmem:[%s1 + $0xe8] sm:$0xff]
    %v56 = vld [vmem:[%s1 + $0xf0] sm:$0xff]
    %v57 = vld [vmem:[%s1 + $0xf8] sm:$0xff]
    %v58 = vld [vmem:[%s1 + $0x100] sm:$0xff]
    %v59 = vld [vmem:[%s1 + $0x108] sm:$0xff]
    %v60 = vld [vmem:[%s1 + $0x110] sm:$0xff]
    %v61 = vld [vmem:[%s1 + $0x118] sm:$0xff]
    %v62 = vld [vmem:[%s1 + $0x120] sm:$0xff]
    %v63 = vld [vmem:[%s1 + $0x128] sm:$0xff]
    %v64 = vld [vmem:[%s1 + $0x130] sm:$0xff]
    %v65 = vld [vmem:[%s1 + $0x138] sm:$0xff]
    %v66 = vld [vmem:[%s2] sm:$0x1]
    %v68 = vlaneseq
    %v69 = vshrl.u32 %v68, 7
    %v70 = vsub.s32 0, %v69
    %v71 = vrot.slane %v66, %v70
    %vm73 = vcmask 523264
    %v75 = vsel %vm73, %v25, 0
    %77 = vmatprep.subr.mxu0 0.0
    %v78 = vand.u32 %v26, 4294901760
    %79 = vmatpush1.msra.mxu0 %v78
    %80 = vmatprep.subr.mxu0 0.0
    %v81 = vand.u32 %v27, 4294901760
    %82 = vmatpush1.msra.mxu0 %v81
    %83 = vmatprep.subr.mxu0 0.0
    %v84 = vand.u32 %v28, 4294901760
    %85 = vmatpush1.msra.mxu0 %v84
    %86 = vmatprep.subr.mxu0 0.0
    %v87 = vand.u32 %v29, 4294901760
    %88 = vmatpush1.msra.mxu0 %v87
    %89 = vmatprep.subr.mxu0 0.0
    %v90 = vand.u32 %v30, 4294901760
    %91 = vmatpush1.msra.mxu0 %v90
    %92 = vmatprep.subr.mxu0 0.0
    %v93 = vand.u32 %v31, 4294901760
    %94 = vmatpush1.msra.mxu0 %v93
    %95 = vmatprep.subr.mxu0 0.0
    %v96 = vand.u32 %v32, 4294901760
    %97 = vmatpush1.msra.mxu0 %v96
    %98 = vmatprep.subr.mxu0 0.0
    %v99 = vand.u32 %v33, 4294901760
    %100 = vmatpush1.msra.mxu0 %v99
    %101 = vmatprep.subr.mxu0 0.0
    %v102 = vand.u32 %v34, 4294901760
    %103 = vmatpush1.msra.mxu0 %v102
    %104 = vmatprep.subr.mxu0 0.0
    %v105 = vand.u32 %v35, 4294901760
    %106 = vmatpush1.msra.mxu0 %v105
    %107 = vmatprep.subr.mxu0 0.0
    %v108 = vand.u32 %v36, 4294901760
    %109 = vmatpush1.msra.mxu0 %v108
    %110 = vmatprep.subr.mxu0 0.0
    %v111 = vand.u32 %v37, 4294901760
    %112 = vmatpush1.msra.mxu0 %v111
    %113 = vmatprep.subr.mxu0 0.0
    %v114 = vand.u32 %v38, 4294901760
    %115 = vmatpush1.msra.mxu0 %v114
    %116 = vmatprep.subr.mxu0 0.0
    %v117 = vand.u32 %v39, 4294901760
    %118 = vmatpush1.msra.mxu0 %v117
    %119 = vmatprep.subr.mxu0 0.0
    %v120 = vand.u32 %v40, 4294901760
    %121 = vmatpush1.msra.mxu0 %v120
    %122 = vmatprep.subr.mxu0 0.0
    %v123 = vand.u32 %v41, 4294901760
    %124 = vmatpush1.msra.mxu0 %v123
    %125 = vmatprep.subr.mxu0 0.0
    %v126 = vand.u32 %v42, 4294901760
    %127 = vmatpush1.msra.mxu0 %v126
    %128 = vmatprep.subr.mxu0 0.0
    %v129 = vand.u32 %v43, 4294901760
    %130 = vmatpush1.msra.mxu0 %v129
    %131 = vmatprep.subr.mxu0 0.0
    %v132 = vand.u32 %v44, 4294901760
    %133 = vmatpush1.msra.mxu0 %v132
    %134 = vmatprep.subr.mxu0 0.0
    %v135 = vand.u32 %v45, 4294901760
    %136 = vmatpush1.msra.mxu0 %v135
    %137 = vmatprep.subr.mxu0 0.0
    %v138 = vand.u32 %v46, 4294901760
    %139 = vmatpush1.msra.mxu0 %v138
    %140 = vmatprep.subr.mxu0 0.0
    %v141 = vand.u32 %v47, 4294901760
    %142 = vmatpush1.msra.mxu0 %v141
    %143 = vmatprep.subr.mxu0 0.0
    %v144 = vand.u32 %v48, 4294901760
    %145 = vmatpush1.msra.mxu0 %v144
    %146 = vmatprep.subr.mxu0 0.0
    %v147 = vand.u32 %v49, 4294901760
    %148 = vmatpush1.msra.mxu0 %v147
    %149 = vmatprep.subr.mxu0 0.0
    %v150 = vand.u32 %v50, 4294901760
    %151 = vmatpush1.msra.mxu0 %v150
    %152 = vmatprep.subr.mxu0 0.0
    %v153 = vand.u32 %v51, 4294901760
    %154 = vmatpush1.msra.mxu0 %v153
    %155 = vmatprep.subr.mxu0 0.0
    %v156 = vand.u32 %v52, 4294901760
    %157 = vmatpush1.msra.mxu0 %v156
    %158 = vmatprep.subr.mxu0 0.0
    %v159 = vand.u32 %v53, 4294901760
    %160 = vmatpush1.msra.mxu0 %v159
    %161 = vmatprep.subr.mxu0 0.0
    %v162 = vand.u32 %v54, 4294901760
    %163 = vmatpush1.msra.mxu0 %v162
    %164 = vmatprep.subr.mxu0 0.0
    %v165 = vand.u32 %v55, 4294901760
    %166 = vmatpush1.msra.mxu0 %v165
    %167 = vmatprep.subr.mxu0 0.0
    %v168 = vand.u32 %v56, 4294901760
    %169 = vmatpush1.msra.mxu0 %v168
    %170 = vmatprep.subr.mxu0 0.0
    %v171 = vand.u32 %v57, 4294901760
    %172 = vmatpush1.msra.mxu0 %v171
    %v173 = vand.u32 %v24, 4294901760
    %v174 = vsub.f32 %v24, %v173
    %v175 = vand.u32 %v174, 4294901760
    %v176 = vsub.f32 %v174, %v175
    %v177 = vand.u32 %v176, 4294901760
    %178 = vmatprep.mubr.f32.mxu0 %v177
    %v179 = vand.u32 %v23, 4294901760
    %v180 = vsub.f32 %v23, %v179
    %v181 = vand.u32 %v180, 4294901760
    %v182 = vsub.f32 %v180, %v181
    %v183 = vand.u32 %v182, 4294901760
    %184 = vmatmul.mubr.f32.gmra.mrb[0].mxu0 %v183
    %v185 = vpop.f32.mrb[0].mxu0
    %v186 = vadd.f32 %v71, %v185
    %v187 = vpop.f32.mrb[0].mxu0
    %188 = vdwg.mxu0
    %189 = vmatprep.subr.mxu0 0.0
    %v190 = vand.u32 %v26, 4294901760
    %v191 = vsub.f32 %v26, %v190
    %v192 = vand.u32 %v191, 4294901760
    %v193 = vsub.f32 %v191, %v192
    %v194 = vand.u32 %v193, 4294901760
    %195 = vmatpush1.msra.mxu0 %v194
    %196 = vmatprep.subr.mxu0 0.0
    %v197 = vand.u32 %v27, 4294901760
    %v198 = vsub.f32 %v27, %v197
    %v199 = vand.u32 %v198, 4294901760
    %v200 = vsub.f32 %v198, %v199
    %v201 = vand.u32 %v200, 4294901760
    %202 = vmatpush1.msra.mxu0 %v201
    %203 = vmatprep.subr.mxu0 0.0
    %v204 = vand.u32 %v28, 4294901760
    %v205 = vsub.f32 %v28, %v204
    %v206 = vand.u32 %v205, 4294901760
    %v207 = vsub.f32 %v205, %v206
    %v208 = vand.u32 %v207, 4294901760
    %209 = vmatpush1.msra.mxu0 %v208
    %210 = vmatprep.subr.mxu0 0.0
    %v211 = vand.u32 %v29, 4294901760
    %v212 = vsub.f32 %v29, %v211
    %v213 = vand.u32 %v212, 4294901760
    %v214 = vsub.f32 %v212, %v213
    %v215 = vand.u32 %v214, 4294901760
    %216 = vmatpush1.msra.mxu0 %v215
    %217 = vmatprep.subr.mxu0 0.0
    %v218 = vand.u32 %v30, 4294901760
    %v219 = vsub.f32 %v30, %v218
    %v220 = vand.u32 %v219, 4294901760
    %v221 = vsub.f32 %v219, %v220
    %v222 = vand.u32 %v221, 4294901760
    %223 = vmatpush1.msra.mxu0 %v222
    %224 = vmatprep.subr.mxu0 0.0
    %v225 = vand.u32 %v31, 4294901760
    %v226 = vsub.f32 %v31, %v225
    %v227 = vand.u32 %v226, 4294901760
    %v228 = vsub.f32 %v226, %v227
    %v229 = vand.u32 %v228, 4294901760
    %230 = vmatpush1.msra.mxu0 %v229
    %231 = vmatprep.subr.mxu0 0.0
    %v232 = vand.u32 %v32, 4294901760
    %v233 = vsub.f32 %v32, %v232
    %v234 = vand.u32 %v233, 4294901760
    %v235 = vsub.f32 %v233, %v234
    %v236 = vand.u32 %v235, 4294901760
    %237 = vmatpush1.msra.mxu0 %v236
    %238 = vmatprep.subr.mxu0 0.0
    %v239 = vand.u32 %v33, 4294901760
    %v240 = vsub.f32 %v33, %v239
    %v241 = vand.u32 %v240, 4294901760
    %v242 = vsub.f32 %v240, %v241
    %v243 = vand.u32 %v242, 4294901760
    %244 = vmatpush1.msra.mxu0 %v243
    %245 = vmatprep.subr.mxu0 0.0
    %v246 = vand.u32 %v34, 4294901760
    %v247 = vsub.f32 %v34, %v246
    %v248 = vand.u32 %v247, 4294901760
    %v249 = vsub.f32 %v247, %v248
    %v250 = vand.u32 %v249, 4294901760
    %251 = vmatpush1.msra.mxu0 %v250
    %252 = vmatprep.subr.mxu0 0.0
    %v253 = vand.u32 %v35, 4294901760
    %v254 = vsub.f32 %v35, %v253
    %v255 = vand.u32 %v254, 4294901760
    %v256 = vsub.f32 %v254, %v255
    %v257 = vand.u32 %v256, 4294901760
    %258 = vmatpush1.msra.mxu0 %v257
    %259 = vmatprep.subr.mxu0 0.0
    %v260 = vand.u32 %v36, 4294901760
    %v261 = vsub.f32 %v36, %v260
    %v262 = vand.u32 %v261, 4294901760
    %v263 = vsub.f32 %v261, %v262
    %v264 = vand.u32 %v263, 4294901760
    %265 = vmatpush1.msra.mxu0 %v264
    %266 = vmatprep.subr.mxu0 0.0
    %v267 = vand.u32 %v37, 4294901760
    %v268 = vsub.f32 %v37, %v267
    %v269 = vand.u32 %v268, 4294901760
    %v270 = vsub.f32 %v268, %v269
    %v271 = vand.u32 %v270, 4294901760
    %272 = vmatpush1.msra.mxu0 %v271
    %273 = vmatprep.subr.mxu0 0.0
    %v274 = vand.u32 %v38, 4294901760
    %v275 = vsub.f32 %v38, %v274
    %v276 = vand.u32 %v275, 4294901760
    %v277 = vsub.f32 %v275, %v276
    %v278 = vand.u32 %v277, 4294901760
    %279 = vmatpush1.msra.mxu0 %v278
    %280 = vmatprep.subr.mxu0 0.0
    %v281 = vand.u32 %v39, 4294901760
    %v282 = vsub.f32 %v39, %v281
    %v283 = vand.u32 %v282, 4294901760
    %v284 = vsub.f32 %v282, %v283
    %v285 = vand.u32 %v284, 4294901760
    %286 = vmatpush1.msra.mxu0 %v285
    %287 = vmatprep.subr.mxu0 0.0
    %v288 = vand.u32 %v40, 4294901760
    %v289 = vsub.f32 %v40, %v288
    %v290 = vand.u32 %v289, 4294901760
    %v291 = vsub.f32 %v289, %v290
    %v292 = vand.u32 %v291, 4294901760
    %293 = vmatpush1.msra.mxu0 %v292
    %294 = vmatprep.subr.mxu0 0.0
    %v295 = vand.u32 %v41, 4294901760
    %v296 = vsub.f32 %v41, %v295
    %v297 = vand.u32 %v296, 4294901760
    %v298 = vsub.f32 %v296, %v297
    %v299 = vand.u32 %v298, 4294901760
    %300 = vmatpush1.msra.mxu0 %v299
    %301 = vmatprep.subr.mxu0 0.0
    %v302 = vand.u32 %v42, 4294901760
    %v303 = vsub.f32 %v42, %v302
    %v304 = vand.u32 %v303, 4294901760
    %v305 = vsub.f32 %v303, %v304
    %v306 = vand.u32 %v305, 4294901760
    %307 = vmatpush1.msra.mxu0 %v306
    %308 = vmatprep.subr.mxu0 0.0
    %v309 = vand.u32 %v43, 4294901760
    %v310 = vsub.f32 %v43, %v309
    %v311 = vand.u32 %v310, 4294901760
    %v312 = vsub.f32 %v310, %v311
    %v313 = vand.u32 %v312, 4294901760
    %314 = vmatpush1.msra.mxu0 %v313
    %315 = vmatprep.subr.mxu0 0.0
    %v316 = vand.u32 %v44, 4294901760
    %v317 = vsub.f32 %v44, %v316
    %v318 = vand.u32 %v317, 4294901760
    %v319 = vsub.f32 %v317, %v318
    %v320 = vand.u32 %v319, 4294901760
    %321 = vmatpush1.msra.mxu0 %v320
    %322 = vmatprep.subr.mxu0 0.0
    %v323 = vand.u32 %v45, 4294901760
    %v324 = vsub.f32 %v45, %v323
    %v325 = vand.u32 %v324, 4294901760
    %v326 = vsub.f32 %v324, %v325
    %v327 = vand.u32 %v326, 4294901760
    %328 = vmatpush1.msra.mxu0 %v327
    %329 = vmatprep.subr.mxu0 0.0
    %v330 = vand.u32 %v46, 4294901760
    %v331 = vsub.f32 %v46, %v330
    %v332 = vand.u32 %v331, 4294901760
    %v333 = vsub.f32 %v331, %v332
    %v334 = vand.u32 %v333, 4294901760
    %335 = vmatpush1.msra.mxu0 %v334
    %336 = vmatprep.subr.mxu0 0.0
    %v337 = vand.u32 %v47, 4294901760
    %v338 = vsub.f32 %v47, %v337
    %v339 = vand.u32 %v338, 4294901760
    %v340 = vsub.f32 %v338, %v339
    %v341 = vand.u32 %v340, 4294901760
    %342 = vmatpush1.msra.mxu0 %v341
    %343 = vmatprep.subr.mxu0 0.0
    %v344 = vand.u32 %v48, 4294901760
    %v345 = vsub.f32 %v48, %v344
    %v346 = vand.u32 %v345, 4294901760
    %v347 = vsub.f32 %v345, %v346
    %v348 = vand.u32 %v347, 4294901760
    %349 = vmatpush1.msra.mxu0 %v348
    %350 = vmatprep.subr.mxu0 0.0
    %v351 = vand.u32 %v49, 4294901760
    %v352 = vsub.f32 %v49, %v351
    %v353 = vand.u32 %v352, 4294901760
    %v354 = vsub.f32 %v352, %v353
    %v355 = vand.u32 %v354, 4294901760
    %356 = vmatpush1.msra.mxu0 %v355
    %357 = vmatprep.subr.mxu0 0.0
    %v358 = vand.u32 %v50, 4294901760
    %v359 = vsub.f32 %v50, %v358
    %v360 = vand.u32 %v359, 4294901760
    %v361 = vsub.f32 %v359, %v360
    %v362 = vand.u32 %v361, 4294901760
    %363 = vmatpush1.msra.mxu0 %v362
    %364 = vmatprep.subr.mxu0 0.0
    %v365 = vand.u32 %v51, 4294901760
    %v366 = vsub.f32 %v51, %v365
    %v367 = vand.u32 %v366, 4294901760
    %v368 = vsub.f32 %v366, %v367
    %v369 = vand.u32 %v368, 4294901760
    %370 = vmatpush1.msra.mxu0 %v369
    %371 = vmatprep.subr.mxu0 0.0
    %v372 = vand.u32 %v52, 4294901760
    %v373 = vsub.f32 %v52, %v372
    %v374 = vand.u32 %v373, 4294901760
    %v375 = vsub.f32 %v373, %v374
    %v376 = vand.u32 %v375, 4294901760
    %377 = vmatpush1.msra.mxu0 %v376
    %378 = vmatprep.subr.mxu0 0.0
    %v379 = vand.u32 %v53, 4294901760
    %v380 = vsub.f32 %v53, %v379
    %v381 = vand.u32 %v380, 4294901760
    %v382 = vsub.f32 %v380, %v381
    %v383 = vand.u32 %v382, 4294901760
    %384 = vmatpush1.msra.mxu0 %v383
    %385 = vmatprep.subr.mxu0 0.0
    %v386 = vand.u32 %v54, 4294901760
    %v387 = vsub.f32 %v54, %v386
    %v388 = vand.u32 %v387, 4294901760
    %v389 = vsub.f32 %v387, %v388
    %v390 = vand.u32 %v389, 4294901760
    %391 = vmatpush1.msra.mxu0 %v390
    %392 = vmatprep.subr.mxu0 0.0
    %v393 = vand.u32 %v55, 4294901760
    %v394 = vsub.f32 %v55, %v393
    %v395 = vand.u32 %v394, 4294901760
    %v396 = vsub.f32 %v394, %v395
    %v397 = vand.u32 %v396, 4294901760
    %398 = vmatpush1.msra.mxu0 %v397
    %399 = vmatprep.subr.mxu0 0.0
    %v400 = vand.u32 %v56, 4294901760
    %v401 = vsub.f32 %v56, %v400
    %v402 = vand.u32 %v401, 4294901760
    %v403 = vsub.f32 %v401, %v402
    %v404 = vand.u32 %v403, 4294901760
    %405 = vmatpush1.msra.mxu0 %v404
    %406 = vmatprep.subr.mxu0 0.0
    %v407 = vand.u32 %v57, 4294901760
    %v408 = vsub.f32 %v57, %v407
    %v409 = vand.u32 %v408, 4294901760
    %v410 = vsub.f32 %v408, %v409
    %v411 = vand.u32 %v410, 4294901760
    %412 = vmatpush1.msra.mxu0 %v411
    %v413 = vand.u32 %v24, 4294901760
    %414 = vmatprep.mubr.f32.mxu0 %v413
    %v415 = vand.u32 %v23, 4294901760
    %416 = vmatmul.mubr.f32.gmra.mrb[0].mxu0 %v415
    %v417 = vpop.f32.mrb[0].mxu0
    %v418 = vadd.f32 %v186, %v417
    %v419 = vpop.f32.mrb[0].mxu0
    %420 = vdwg.mxu0
    %421 = vmatprep.subr.mxu0 0.0
    %v422 = vand.u32 %v26, 4294901760
    %v423 = vsub.f32 %v26, %v422
    %424 = vmatpush1.msra.mxu0 %v423
    %425 = vmatprep.subr.mxu0 0.0
    %v426 = vand.u32 %v27, 4294901760
    %v427 = vsub.f32 %v27, %v426
    %428 = vmatpush1.msra.mxu0 %v427
    %429 = vmatprep.subr.mxu0 0.0
    %v430 = vand.u32 %v28, 4294901760
    %v431 = vsub.f32 %v28, %v430
    %432 = vmatpush1.msra.mxu0 %v431
    %433 = vmatprep.subr.mxu0 0.0
    %v434 = vand.u32 %v29, 4294901760
    %v435 = vsub.f32 %v29, %v434
    %436 = vmatpush1.msra.mxu0 %v435
    %437 = vmatprep.subr.mxu0 0.0
    %v438 = vand.u32 %v30, 4294901760
    %v439 = vsub.f32 %v30, %v438
    %440 = vmatpush1.msra.mxu0 %v439
    %441 = vmatprep.subr.mxu0 0.0
    %v442 = vand.u32 %v31, 4294901760
    %v443 = vsub.f32 %v31, %v442
    %444 = vmatpush1.msra.mxu0 %v443
    %445 = vmatprep.subr.mxu0 0.0
    %v446 = vand.u32 %v32, 4294901760
    %v447 = vsub.f32 %v32, %v446
    %448 = vmatpush1.msra.mxu0 %v447
    %449 = vmatprep.subr.mxu0 0.0
    %v450 = vand.u32 %v33, 4294901760
    %v451 = vsub.f32 %v33, %v450
    %452 = vmatpush1.msra.mxu0 %v451
    %453 = vmatprep.subr.mxu0 0.0
    %v454 = vand.u32 %v34, 4294901760
    %v455 = vsub.f32 %v34, %v454
    %456 = vmatpush1.msra.mxu0 %v455
    %457 = vmatprep.subr.mxu0 0.0
    %v458 = vand.u32 %v35, 4294901760
    %v459 = vsub.f32 %v35, %v458
    %460 = vmatpush1.msra.mxu0 %v459
    %461 = vmatprep.subr.mxu0 0.0
    %v462 = vand.u32 %v36, 4294901760
    %v463 = vsub.f32 %v36, %v462
    %464 = vmatpush1.msra.mxu0 %v463
    %465 = vmatprep.subr.mxu0 0.0
    %v466 = vand.u32 %v37, 4294901760
    %v467 = vsub.f32 %v37, %v466
    %468 = vmatpush1.msra.mxu0 %v467
    %469 = vmatprep.subr.mxu0 0.0
    %v470 = vand.u32 %v38, 4294901760
    %v471 = vsub.f32 %v38, %v470
    %472 = vmatpush1.msra.mxu0 %v471
    %473 = vmatprep.subr.mxu0 0.0
    %v474 = vand.u32 %v39, 4294901760
    %v475 = vsub.f32 %v39, %v474
    %476 = vmatpush1.msra.mxu0 %v475
    %477 = vmatprep.subr.mxu0 0.0
    %v478 = vand.u32 %v40, 4294901760
    %v479 = vsub.f32 %v40, %v478
    %480 = vmatpush1.msra.mxu0 %v479
    %481 = vmatprep.subr.mxu0 0.0
    %v482 = vand.u32 %v41, 4294901760
    %v483 = vsub.f32 %v41, %v482
    %484 = vmatpush1.msra.mxu0 %v483
    %485 = vmatprep.subr.mxu0 0.0
    %v486 = vand.u32 %v42, 4294901760
    %v487 = vsub.f32 %v42, %v486
    %488 = vmatpush1.msra.mxu0 %v487
    %489 = vmatprep.subr.mxu0 0.0
    %v490 = vand.u32 %v43, 4294901760
    %v491 = vsub.f32 %v43, %v490
    %492 = vmatpush1.msra.mxu0 %v491
    %493 = vmatprep.subr.mxu0 0.0
    %v494 = vand.u32 %v44, 4294901760
    %v495 = vsub.f32 %v44, %v494
    %496 = vmatpush1.msra.mxu0 %v495
    %497 = vmatprep.subr.mxu0 0.0
    %v498 = vand.u32 %v45, 4294901760
    %v499 = vsub.f32 %v45, %v498
    %500 = vmatpush1.msra.mxu0 %v499
    %501 = vmatprep.subr.mxu0 0.0
    %v502 = vand.u32 %v46, 4294901760
    %v503 = vsub.f32 %v46, %v502
    %504 = vmatpush1.msra.mxu0 %v503
    %505 = vmatprep.subr.mxu0 0.0
    %v506 = vand.u32 %v47, 4294901760
    %v507 = vsub.f32 %v47, %v506
    %508 = vmatpush1.msra.mxu0 %v507
    %509 = vmatprep.subr.mxu0 0.0
    %v510 = vand.u32 %v48, 4294901760
    %v511 = vsub.f32 %v48, %v510
    %512 = vmatpush1.msra.mxu0 %v511
    %513 = vmatprep.subr.mxu0 0.0
    %v514 = vand.u32 %v49, 4294901760
    %v515 = vsub.f32 %v49, %v514
    %516 = vmatpush1.msra.mxu0 %v515
    %517 = vmatprep.subr.mxu0 0.0
    %v518 = vand.u32 %v50, 4294901760
    %v519 = vsub.f32 %v50, %v518
    %520 = vmatpush1.msra.mxu0 %v519
    %521 = vmatprep.subr.mxu0 0.0
    %v522 = vand.u32 %v51, 4294901760
    %v523 = vsub.f32 %v51, %v522
    %524 = vmatpush1.msra.mxu0 %v523
    %525 = vmatprep.subr.mxu0 0.0
    %v526 = vand.u32 %v52, 4294901760
    %v527 = vsub.f32 %v52, %v526
    %528 = vmatpush1.msra.mxu0 %v527
    %529 = vmatprep.subr.mxu0 0.0
    %v530 = vand.u32 %v53, 4294901760
    %v531 = vsub.f32 %v53, %v530
    %532 = vmatpush1.msra.mxu0 %v531
    %533 = vmatprep.subr.mxu0 0.0
    %v534 = vand.u32 %v54, 4294901760
    %v535 = vsub.f32 %v54, %v534
    %536 = vmatpush1.msra.mxu0 %v535
    %537 = vmatprep.subr.mxu0 0.0
    %v538 = vand.u32 %v55, 4294901760
    %v539 = vsub.f32 %v55, %v538
    %540 = vmatpush1.msra.mxu0 %v539
    %541 = vmatprep.subr.mxu0 0.0
    %v542 = vand.u32 %v56, 4294901760
    %v543 = vsub.f32 %v56, %v542
    %544 = vmatpush1.msra.mxu0 %v543
    %545 = vmatprep.subr.mxu0 0.0
    %v546 = vand.u32 %v57, 4294901760
    %v547 = vsub.f32 %v57, %v546
    %548 = vmatpush1.msra.mxu0 %v547
    %v549 = vand.u32 %v24, 4294901760
    %v550 = vsub.f32 %v24, %v549
    %551 = vmatprep.mubr.f32.mxu0 %v550
    %v552 = vand.u32 %v23, 4294901760
    %v553 = vsub.f32 %v23, %v552
    %554 = vmatmul.mubr.f32.gmra.mrb[0].mxu0 %v553
    %v555 = vpop.f32.mrb[0].mxu0
    %v556 = vadd.f32 %v418, %v555
    %v557 = vpop.f32.mrb[0].mxu0
    %558 = vdwg.mxu0
    %559 = vmatprep.subr.mxu0 0.0
    %v560 = vand.u32 %v26, 4294901760
    %561 = vmatpush1.msra.mxu0 %v560
    %562 = vmatprep.subr.mxu0 0.0
    %v563 = vand.u32 %v27, 4294901760
    %564 = vmatpush1.msra.mxu0 %v563
    %565 = vmatprep.subr.mxu0 0.0
    %v566 = vand.u32 %v28, 4294901760
    %567 = vmatpush1.msra.mxu0 %v566
    %568 = vmatprep.subr.mxu0 0.0
    %v569 = vand.u32 %v29, 4294901760
    %570 = vmatpush1.msra.mxu0 %v569
    %571 = vmatprep.subr.mxu0 0.0
    %v572 = vand.u32 %v30, 4294901760
    %573 = vmatpush1.msra.mxu0 %v572
    %574 = vmatprep.subr.mxu0 0.0
    %v575 = vand.u32 %v31, 4294901760
    %576 = vmatpush1.msra.mxu0 %v575
    %577 = vmatprep.subr.mxu0 0.0
    %v578 = vand.u32 %v32, 4294901760
    %579 = vmatpush1.msra.mxu0 %v578
    %580 = vmatprep.subr.mxu0 0.0
    %v581 = vand.u32 %v33, 4294901760
    %582 = vmatpush1.msra.mxu0 %v581
    %583 = vmatprep.subr.mxu0 0.0
    %v584 = vand.u32 %v34, 4294901760
    %585 = vmatpush1.msra.mxu0 %v584
    %586 = vmatprep.subr.mxu0 0.0
    %v587 = vand.u32 %v35, 4294901760
    %588 = vmatpush1.msra.mxu0 %v587
    %589 = vmatprep.subr.mxu0 0.0
    %v590 = vand.u32 %v36, 4294901760
    %591 = vmatpush1.msra.mxu0 %v590
    %592 = vmatprep.subr.mxu0 0.0
    %v593 = vand.u32 %v37, 4294901760
    %594 = vmatpush1.msra.mxu0 %v593
    %595 = vmatprep.subr.mxu0 0.0
    %v596 = vand.u32 %v38, 4294901760
    %597 = vmatpush1.msra.mxu0 %v596
    %598 = vmatprep.subr.mxu0 0.0
    %v599 = vand.u32 %v39, 4294901760
    %600 = vmatpush1.msra.mxu0 %v599
    %601 = vmatprep.subr.mxu0 0.0
    %v602 = vand.u32 %v40, 4294901760
    %603 = vmatpush1.msra.mxu0 %v602
    %604 = vmatprep.subr.mxu0 0.0
    %v605 = vand.u32 %v41, 4294901760
    %606 = vmatpush1.msra.mxu0 %v605
    %607 = vmatprep.subr.mxu0 0.0
    %v608 = vand.u32 %v42, 4294901760
    %609 = vmatpush1.msra.mxu0 %v608
    %610 = vmatprep.subr.mxu0 0.0
    %v611 = vand.u32 %v43, 4294901760
    %612 = vmatpush1.msra.mxu0 %v611
    %613 = vmatprep.subr.mxu0 0.0
    %v614 = vand.u32 %v44, 4294901760
    %615 = vmatpush1.msra.mxu0 %v614
    %616 = vmatprep.subr.mxu0 0.0
    %v617 = vand.u32 %v45, 4294901760
    %618 = vmatpush1.msra.mxu0 %v617
    %619 = vmatprep.subr.mxu0 0.0
    %v620 = vand.u32 %v46, 4294901760
    %621 = vmatpush1.msra.mxu0 %v620
    %622 = vmatprep.subr.mxu0 0.0
    %v623 = vand.u32 %v47, 4294901760
    %624 = vmatpush1.msra.mxu0 %v623
    %625 = vmatprep.subr.mxu0 0.0
    %v626 = vand.u32 %v48, 4294901760
    %627 = vmatpush1.msra.mxu0 %v626
    %628 = vmatprep.subr.mxu0 0.0
    %v629 = vand.u32 %v49, 4294901760
    %630 = vmatpush1.msra.mxu0 %v629
    %631 = vmatprep.subr.mxu0 0.0
    %v632 = vand.u32 %v50, 4294901760
    %633 = vmatpush1.msra.mxu0 %v632
    %634 = vmatprep.subr.mxu0 0.0
    %v635 = vand.u32 %v51, 4294901760
    %636 = vmatpush1.msra.mxu0 %v635
    %637 = vmatprep.subr.mxu0 0.0
    %v638 = vand.u32 %v52, 4294901760
    %639 = vmatpush1.msra.mxu0 %v638
    %640 = vmatprep.subr.mxu0 0.0
    %v641 = vand.u32 %v53, 4294901760
    %642 = vmatpush1.msra.mxu0 %v641
    %643 = vmatprep.subr.mxu0 0.0
    %v644 = vand.u32 %v54, 4294901760
    %645 = vmatpush1.msra.mxu0 %v644
    %646 = vmatprep.subr.mxu0 0.0
    %v647 = vand.u32 %v55, 4294901760
    %648 = vmatpush1.msra.mxu0 %v647
    %649 = vmatprep.subr.mxu0 0.0
    %v650 = vand.u32 %v56, 4294901760
    %651 = vmatpush1.msra.mxu0 %v650
    %652 = vmatprep.subr.mxu0 0.0
    %v653 = vand.u32 %v57, 4294901760
    %654 = vmatpush1.msra.mxu0 %v653
    %v655 = vand.u32 %v24, 4294901760
    %v656 = vsub.f32 %v24, %v655
    %v657 = vand.u32 %v656, 4294901760
    %658 = vmatprep.mubr.f32.mxu0 %v657
    %v659 = vand.u32 %v23, 4294901760
    %v660 = vsub.f32 %v23, %v659
    %v661 = vand.u32 %v660, 4294901760
    %662 = vmatmul.mubr.f32.gmra.mrb[0].mxu0 %v661
    %v663 = vpop.f32.mrb[0].mxu0
    %v664 = vadd.f32 %v556, %v663
    %v665 = vpop.f32.mrb[0].mxu0
    %666 = vdwg.mxu0
    %667 = vmatprep.subr.mxu0 0.0
    %v668 = vand.u32 %v26, 4294901760
    %v669 = vsub.f32 %v26, %v668
    %v670 = vand.u32 %v669, 4294901760
    %671 = vmatpush1.msra.mxu0 %v670
    %672 = vmatprep.subr.mxu0 0.0
    %v673 = vand.u32 %v27, 4294901760
    %v674 = vsub.f32 %v27, %v673
    %v675 = vand.u32 %v674, 4294901760
    %676 = vmatpush1.msra.mxu0 %v675
    %677 = vmatprep.subr.mxu0 0.0
    %v678 = vand.u32 %v28, 4294901760
    %v679 = vsub.f32 %v28, %v678
    %v680 = vand.u32 %v679, 4294901760
    %681 = vmatpush1.msra.mxu0 %v680
    %682 = vmatprep.subr.mxu0 0.0
    %v683 = vand.u32 %v29, 4294901760
    %v684 = vsub.f32 %v29, %v683
    %v685 = vand.u32 %v684, 4294901760
    %686 = vmatpush1.msra.mxu0 %v685
    %687 = vmatprep.subr.mxu0 0.0
    %v688 = vand.u32 %v30, 4294901760
    %v689 = vsub.f32 %v30, %v688
    %v690 = vand.u32 %v689, 4294901760
    %691 = vmatpush1.msra.mxu0 %v690
    %692 = vmatprep.subr.mxu0 0.0
    %v693 = vand.u32 %v31, 4294901760
    %v694 = vsub.f32 %v31, %v693
    %v695 = vand.u32 %v694, 4294901760
    %696 = vmatpush1.msra.mxu0 %v695
    %697 = vmatprep.subr.mxu0 0.0
    %v698 = vand.u32 %v32, 4294901760
    %v699 = vsub.f32 %v32, %v698
    %v700 = vand.u32 %v699, 4294901760
    %701 = vmatpush1.msra.mxu0 %v700
    %702 = vmatprep.subr.mxu0 0.0
    %v703 = vand.u32 %v33, 4294901760
    %v704 = vsub.f32 %v33, %v703
    %v705 = vand.u32 %v704, 4294901760
    %706 = vmatpush1.msra.mxu0 %v705
    %707 = vmatprep.subr.mxu0 0.0
    %v708 = vand.u32 %v34, 4294901760
    %v709 = vsub.f32 %v34, %v708
    %v710 = vand.u32 %v709, 4294901760
    %711 = vmatpush1.msra.mxu0 %v710
    %712 = vmatprep.subr.mxu0 0.0
    %v713 = vand.u32 %v35, 4294901760
    %v714 = vsub.f32 %v35, %v713
    %v715 = vand.u32 %v714, 4294901760
    %716 = vmatpush1.msra.mxu0 %v715
    %717 = vmatprep.subr.mxu0 0.0
    %v718 = vand.u32 %v36, 4294901760
    %v719 = vsub.f32 %v36, %v718
    %v720 = vand.u32 %v719, 4294901760
    %721 = vmatpush1.msra.mxu0 %v720
    %722 = vmatprep.subr.mxu0 0.0
    %v723 = vand.u32 %v37, 4294901760
    %v724 = vsub.f32 %v37, %v723
    %v725 = vand.u32 %v724, 4294901760
    %726 = vmatpush1.msra.mxu0 %v725
    %727 = vmatprep.subr.mxu0 0.0
    %v728 = vand.u32 %v38, 4294901760
    %v729 = vsub.f32 %v38, %v728
    %v730 = vand.u32 %v729, 4294901760
    %731 = vmatpush1.msra.mxu0 %v730
    %732 = vmatprep.subr.mxu0 0.0
    %v733 = vand.u32 %v39, 4294901760
    %v734 = vsub.f32 %v39, %v733
    %v735 = vand.u32 %v734, 4294901760
    %736 = vmatpush1.msra.mxu0 %v735
    %737 = vmatprep.subr.mxu0 0.0
    %v738 = vand.u32 %v40, 4294901760
    %v739 = vsub.f32 %v40, %v738
    %v740 = vand.u32 %v739, 4294901760
    %741 = vmatpush1.msra.mxu0 %v740
    %742 = vmatprep.subr.mxu0 0.0
    %v743 = vand.u32 %v41, 4294901760
    %v744 = vsub.f32 %v41, %v743
    %v745 = vand.u32 %v744, 4294901760
    %746 = vmatpush1.msra.mxu0 %v745
    %747 = vmatprep.subr.mxu0 0.0
    %v748 = vand.u32 %v42, 4294901760
    %v749 = vsub.f32 %v42, %v748
    %v750 = vand.u32 %v749, 4294901760
    %751 = vmatpush1.msra.mxu0 %v750
    %752 = vmatprep.subr.mxu0 0.0
    %v753 = vand.u32 %v43, 4294901760
    %v754 = vsub.f32 %v43, %v753
    %v755 = vand.u32 %v754, 4294901760
    %756 = vmatpush1.msra.mxu0 %v755
    %757 = vmatprep.subr.mxu0 0.0
    %v758 = vand.u32 %v44, 4294901760
    %v759 = vsub.f32 %v44, %v758
    %v760 = vand.u32 %v759, 4294901760
    %761 = vmatpush1.msra.mxu0 %v760
    %762 = vmatprep.subr.mxu0 0.0
    %v763 = vand.u32 %v45, 4294901760
    %v764 = vsub.f32 %v45, %v763
    %v765 = vand.u32 %v764, 4294901760
    %766 = vmatpush1.msra.mxu0 %v765
    %767 = vmatprep.subr.mxu0 0.0
    %v768 = vand.u32 %v46, 4294901760
    %v769 = vsub.f32 %v46, %v768
    %v770 = vand.u32 %v769, 4294901760
    %771 = vmatpush1.msra.mxu0 %v770
    %772 = vmatprep.subr.mxu0 0.0
    %v773 = vand.u32 %v47, 4294901760
    %v774 = vsub.f32 %v47, %v773
    %v775 = vand.u32 %v774, 4294901760
    %776 = vmatpush1.msra.mxu0 %v775
    %777 = vmatprep.subr.mxu0 0.0
    %v778 = vand.u32 %v48, 4294901760
    %v779 = vsub.f32 %v48, %v778
    %v780 = vand.u32 %v779, 4294901760
    %781 = vmatpush1.msra.mxu0 %v780
    %782 = vmatprep.subr.mxu0 0.0
    %v783 = vand.u32 %v49, 4294901760
    %v784 = vsub.f32 %v49, %v783
    %v785 = vand.u32 %v784, 4294901760
    %786 = vmatpush1.msra.mxu0 %v785
    %787 = vmatprep.subr.mxu0 0.0
    %v788 = vand.u32 %v50, 4294901760
    %v789 = vsub.f32 %v50, %v788
    %v790 = vand.u32 %v789, 4294901760
    %791 = vmatpush1.msra.mxu0 %v790
    %792 = vmatprep.subr.mxu0 0.0
    %v793 = vand.u32 %v51, 4294901760
    %v794 = vsub.f32 %v51, %v793
    %v795 = vand.u32 %v794, 4294901760
    %796 = vmatpush1.msra.mxu0 %v795
    %797 = vmatprep.subr.mxu0 0.0
    %v798 = vand.u32 %v52, 4294901760
    %v799 = vsub.f32 %v52, %v798
    %v800 = vand.u32 %v799, 4294901760
    %801 = vmatpush1.msra.mxu0 %v800
    %802 = vmatprep.subr.mxu0 0.0
    %v803 = vand.u32 %v53, 4294901760
    %v804 = vsub.f32 %v53, %v803
    %v805 = vand.u32 %v804, 4294901760
    %806 = vmatpush1.msra.mxu0 %v805
    %807 = vmatprep.subr.mxu0 0.0
    %v808 = vand.u32 %v54, 4294901760
    %v809 = vsub.f32 %v54, %v808
    %v810 = vand.u32 %v809, 4294901760
    %811 = vmatpush1.msra.mxu0 %v810
    %812 = vmatprep.subr.mxu0 0.0
    %v813 = vand.u32 %v55, 4294901760
    %v814 = vsub.f32 %v55, %v813
    %v815 = vand.u32 %v814, 4294901760
    %816 = vmatpush1.msra.mxu0 %v815
    %817 = vmatprep.subr.mxu0 0.0
    %v818 = vand.u32 %v56, 4294901760
    %v819 = vsub.f32 %v56, %v818
    %v820 = vand.u32 %v819, 4294901760
    %821 = vmatpush1.msra.mxu0 %v820
    %822 = vmatprep.subr.mxu0 0.0
    %v823 = vand.u32 %v57, 4294901760
    %v824 = vsub.f32 %v57, %v823
    %v825 = vand.u32 %v824, 4294901760
    %826 = vmatpush1.msra.mxu0 %v825
    %v827 = vand.u32 %v24, 4294901760
    %828 = vmatprep.mubr.f32.mxu0 %v827
    %v829 = vand.u32 %v23, 4294901760
    %830 = vmatmul.mubr.f32.gmra.mrb[0].mxu0 %v829
    %v831 = vpop.f32.mrb[0].mxu0
    %v832 = vadd.f32 %v664, %v831
    %v833 = vpop.f32.mrb[0].mxu0
    %834 = vdwg.mxu0
    %835 = vmatprep.subr.mxu0 0.0
    %v836 = vand.u32 %v26, 4294901760
    %837 = vmatpush1.msra.mxu0 %v836
    %838 = vmatprep.subr.mxu0 0.0
    %v839 = vand.u32 %v27, 4294901760
    %840 = vmatpush1.msra.mxu0 %v839
    %841 = vmatprep.subr.mxu0 0.0
    %v842 = vand.u32 %v28, 4294901760
    %843 = vmatpush1.msra.mxu0 %v842
    %844 = vmatprep.subr.mxu0 0.0
    %v845 = vand.u32 %v29, 4294901760
    %846 = vmatpush1.msra.mxu0 %v845
    %847 = vmatprep.subr.mxu0 0.0
    %v848 = vand.u32 %v30, 4294901760
    %849 = vmatpush1.msra.mxu0 %v848
    %850 = vmatprep.subr.mxu0 0.0
    %v851 = vand.u32 %v31, 4294901760
    %852 = vmatpush1.msra.mxu0 %v851
    %853 = vmatprep.subr.mxu0 0.0
    %v854 = vand.u32 %v32, 4294901760
    %855 = vmatpush1.msra.mxu0 %v854
    %856 = vmatprep.subr.mxu0 0.0
    %v857 = vand.u32 %v33, 4294901760
    %858 = vmatpush1.msra.mxu0 %v857
    %859 = vmatprep.subr.mxu0 0.0
    %v860 = vand.u32 %v34, 4294901760
    %861 = vmatpush1.msra.mxu0 %v860
    %862 = vmatprep.subr.mxu0 0.0
    %v863 = vand.u32 %v35, 4294901760
    %864 = vmatpush1.msra.mxu0 %v863
    %865 = vmatprep.subr.mxu0 0.0
    %v866 = vand.u32 %v36, 4294901760
    %867 = vmatpush1.msra.mxu0 %v866
    %868 = vmatprep.subr.mxu0 0.0
    %v869 = vand.u32 %v37, 4294901760
    %870 = vmatpush1.msra.mxu0 %v869
    %871 = vmatprep.subr.mxu0 0.0
    %v872 = vand.u32 %v38, 4294901760
    %873 = vmatpush1.msra.mxu0 %v872
    %874 = vmatprep.subr.mxu0 0.0
    %v875 = vand.u32 %v39, 4294901760
    %876 = vmatpush1.msra.mxu0 %v875
    %877 = vmatprep.subr.mxu0 0.0
    %v878 = vand.u32 %v40, 4294901760
    %879 = vmatpush1.msra.mxu0 %v878
    %880 = vmatprep.subr.mxu0 0.0
    %v881 = vand.u32 %v41, 4294901760
    %882 = vmatpush1.msra.mxu0 %v881
    %883 = vmatprep.subr.mxu0 0.0
    %v884 = vand.u32 %v42, 4294901760
    %885 = vmatpush1.msra.mxu0 %v884
    %886 = vmatprep.subr.mxu0 0.0
    %v887 = vand.u32 %v43, 4294901760
    %888 = vmatpush1.msra.mxu0 %v887
    %889 = vmatprep.subr.mxu0 0.0
    %v890 = vand.u32 %v44, 4294901760
    %891 = vmatpush1.msra.mxu0 %v890
    %892 = vmatprep.subr.mxu0 0.0
    %v893 = vand.u32 %v45, 4294901760
    %894 = vmatpush1.msra.mxu0 %v893
    %895 = vmatprep.subr.mxu0 0.0
    %v896 = vand.u32 %v46, 4294901760
    %897 = vmatpush1.msra.mxu0 %v896
    %898 = vmatprep.subr.mxu0 0.0
    %v899 = vand.u32 %v47, 4294901760
    %900 = vmatpush1.msra.mxu0 %v899
    %901 = vmatprep.subr.mxu0 0.0
    %v902 = vand.u32 %v48, 4294901760
    %903 = vmatpush1.msra.mxu0 %v902
    %904 = vmatprep.subr.mxu0 0.0
    %v905 = vand.u32 %v49, 4294901760
    %906 = vmatpush1.msra.mxu0 %v905
    %907 = vmatprep.subr.mxu0 0.0
    %v908 = vand.u32 %v50, 4294901760
    %909 = vmatpush1.msra.mxu0 %v908
    %910 = vmatprep.subr.mxu0 0.0
    %v911 = vand.u32 %v51, 4294901760
    %912 = vmatpush1.msra.mxu0 %v911
    %913 = vmatprep.subr.mxu0 0.0
    %v914 = vand.u32 %v52, 4294901760
    %915 = vmatpush1.msra.mxu0 %v914
    %916 = vmatprep.subr.mxu0 0.0
    %v917 = vand.u32 %v53, 4294901760
    %918 = vmatpush1.msra.mxu0 %v917
    %919 = vmatprep.subr.mxu0 0.0
    %v920 = vand.u32 %v54, 4294901760
    %921 = vmatpush1.msra.mxu0 %v920
    %922 = vmatprep.subr.mxu0 0.0
    %v923 = vand.u32 %v55, 4294901760
    %924 = vmatpush1.msra.mxu0 %v923
    %925 = vmatprep.subr.mxu0 0.0
    %v926 = vand.u32 %v56, 4294901760
    %927 = vmatpush1.msra.mxu0 %v926
    %928 = vmatprep.subr.mxu0 0.0
    %v929 = vand.u32 %v57, 4294901760
    %930 = vmatpush1.msra.mxu0 %v929
    %v931 = vand.u32 %v24, 4294901760
    %932 = vmatprep.mubr.f32.mxu0 %v931
    %v933 = vand.u32 %v23, 4294901760
    %934 = vmatmul.mubr.f32.gmra.mrb[0].mxu0 %v933
    %v935 = vpop.f32.mrb[0].mxu0
    %v936 = vadd.f32 %v832, %v935
    %v937 = vpop.f32.mrb[0].mxu0
    %938 = vdwg.mxu0
    %939 = vmatprep.subr.mxu0 0.0
    %v940 = vand.u32 %v58, 4294901760
    %941 = vmatpush1.msra.mxu0 %v940
    %942 = vmatprep.subr.mxu0 0.0
    %v943 = vand.u32 %v59, 4294901760
    %944 = vmatpush1.msra.mxu0 %v943
    %945 = vmatprep.subr.mxu0 0.0
    %v946 = vand.u32 %v60, 4294901760
    %947 = vmatpush1.msra.mxu0 %v946
    %948 = vmatprep.subr.mxu0 0.0
    %v949 = vand.u32 %v61, 4294901760
    %950 = vmatpush1.msra.mxu0 %v949
    %951 = vmatprep.subr.mxu0 0.0
    %v952 = vand.u32 %v62, 4294901760
    %953 = vmatpush1.msra.mxu0 %v952
    %954 = vmatprep.subr.mxu0 0.0
    %v955 = vand.u32 %v63, 4294901760
    %956 = vmatpush1.msra.mxu0 %v955
    %957 = vmatprep.subr.mxu0 0.0
    %v958 = vand.u32 %v64, 4294901760
    %959 = vmatpush1.msra.mxu0 %v958
    %960 = vmatprep.subr.mxu0 0.0
    %v961 = vand.u32 %v65, 4294901760
    %962 = vmatpush1.msra.mxu0 %v961
    %963 = vmatprep.subr.mxu0 0.0
    %964 = vmatpush1.msra.mxu0 0.0
    %965 = vmatprep.subr.mxu0 0.0
    %966 = vmatpush1.msra.mxu0 0.0
    %967 = vmatprep.subr.mxu0 0.0
    %968 = vmatpush1.msra.mxu0 0.0
    %969 = vmatprep.subr.mxu0 0.0
    %970 = vmatpush1.msra.mxu0 0.0
    %971 = vmatprep.subr.mxu0 0.0
    %972 = vmatpush1.msra.mxu0 0.0
    %973 = vmatprep.subr.mxu0 0.0
    %974 = vmatpush1.msra.mxu0 0.0
    %975 = vmatprep.subr.mxu0 0.0
    %976 = vmatpush1.msra.mxu0 0.0
    %977 = vmatprep.subr.mxu0 0.0
    %978 = vmatpush1.msra.mxu0 0.0
    %979 = vmatprep.subr.mxu0 0.0
    %980 = vmatpush1.msra.mxu0 0.0
    %981 = vmatprep.subr.mxu0 0.0
    %982 = vmatpush1.msra.mxu0 0.0
    %983 = vmatprep.subr.mxu0 0.0
    %984 = vmatpush1.msra.mxu0 0.0
    %985 = vmatprep.subr.mxu0 0.0
    %986 = vmatpush1.msra.mxu0 0.0
    %987 = vmatprep.subr.mxu0 0.0
    %988 = vmatpush1.msra.mxu0 0.0
    %989 = vmatprep.subr.mxu0 0.0
    %990 = vmatpush1.msra.mxu0 0.0
    %991 = vmatprep.subr.mxu0 0.0
    %992 = vmatpush1.msra.mxu0 0.0
    %993 = vmatprep.subr.mxu0 0.0
    %994 = vmatpush1.msra.mxu0 0.0
    %995 = vmatprep.subr.mxu0 0.0
    %996 = vmatpush1.msra.mxu0 0.0
    %997 = vmatprep.subr.mxu0 0.0
    %998 = vmatpush1.msra.mxu0 0.0
    %999 = vmatprep.subr.mxu0 0.0
    %1000 = vmatpush1.msra.mxu0 0.0
    %1001 = vmatprep.subr.mxu0 0.0
    %1002 = vmatpush1.msra.mxu0 0.0
    %1003 = vmatprep.subr.mxu0 0.0
    %1004 = vmatpush1.msra.mxu0 0.0
    %1005 = vmatprep.subr.mxu0 0.0
    %1006 = vmatpush1.msra.mxu0 0.0
    %1007 = vmatprep.subr.mxu0 0.0
    %1008 = vmatpush1.msra.mxu0 0.0
    %1009 = vmatprep.subr.mxu0 0.0
    %1010 = vmatpush1.msra.mxu0 0.0
    %1011 = vmatprep.mubr.f32.mxu0 0.0
    %v1012 = vand.u32 %v75, 4294901760
    %v1013 = vsub.f32 %v75, %v1012
    %v1014 = vand.u32 %v1013, 4294901760
    %v1015 = vsub.f32 %v1013, %v1014
    %v1016 = vand.u32 %v1015, 4294901760
    %1017 = vmatmul.mubr.f32.gmra.mrb[0].mxu0 %v1016
    %v1018 = vpop.f32.mrb[0].mxu0
    %v1019 = vadd.f32 %v936, %v1018
    %v1020 = vpop.f32.mrb[0].mxu0
    %1021 = vdwg.mxu0
    %1022 = vmatprep.subr.mxu0 0.0
    %v1023 = vand.u32 %v58, 4294901760
    %v1024 = vsub.f32 %v58, %v1023
    %v1025 = vand.u32 %v1024, 4294901760
    %v1026 = vsub.f32 %v1024, %v1025
    %v1027 = vand.u32 %v1026, 4294901760
    %1028 = vmatpush1.msra.mxu0 %v1027
    %1029 = vmatprep.subr.mxu0 0.0
    %v1030 = vand.u32 %v59, 4294901760
    %v1031 = vsub.f32 %v59, %v1030
    %v1032 = vand.u32 %v1031, 4294901760
    %v1033 = vsub.f32 %v1031, %v1032
    %v1034 = vand.u32 %v1033, 4294901760
    %1035 = vmatpush1.msra.mxu0 %v1034
    %1036 = vmatprep.subr.mxu0 0.0
    %v1037 = vand.u32 %v60, 4294901760
    %v1038 = vsub.f32 %v60, %v1037
    %v1039 = vand.u32 %v1038, 4294901760
    %v1040 = vsub.f32 %v1038, %v1039
    %v1041 = vand.u32 %v1040, 4294901760
    %1042 = vmatpush1.msra.mxu0 %v1041
    %1043 = vmatprep.subr.mxu0 0.0
    %v1044 = vand.u32 %v61, 4294901760
    %v1045 = vsub.f32 %v61, %v1044
    %v1046 = vand.u32 %v1045, 4294901760
    %v1047 = vsub.f32 %v1045, %v1046
    %v1048 = vand.u32 %v1047, 4294901760
    %1049 = vmatpush1.msra.mxu0 %v1048
    %1050 = vmatprep.subr.mxu0 0.0
    %v1051 = vand.u32 %v62, 4294901760
    %v1052 = vsub.f32 %v62, %v1051
    %v1053 = vand.u32 %v1052, 4294901760
    %v1054 = vsub.f32 %v1052, %v1053
    %v1055 = vand.u32 %v1054, 4294901760
    %1056 = vmatpush1.msra.mxu0 %v1055
    %1057 = vmatprep.subr.mxu0 0.0
    %v1058 = vand.u32 %v63, 4294901760
    %v1059 = vsub.f32 %v63, %v1058
    %v1060 = vand.u32 %v1059, 4294901760
    %v1061 = vsub.f32 %v1059, %v1060
    %v1062 = vand.u32 %v1061, 4294901760
    %1063 = vmatpush1.msra.mxu0 %v1062
    %1064 = vmatprep.subr.mxu0 0.0
    %v1065 = vand.u32 %v64, 4294901760
    %v1066 = vsub.f32 %v64, %v1065
    %v1067 = vand.u32 %v1066, 4294901760
    %v1068 = vsub.f32 %v1066, %v1067
    %v1069 = vand.u32 %v1068, 4294901760
    %1070 = vmatpush1.msra.mxu0 %v1069
    %1071 = vmatprep.subr.mxu0 0.0
    %v1072 = vand.u32 %v65, 4294901760
    %v1073 = vsub.f32 %v65, %v1072
    %v1074 = vand.u32 %v1073, 4294901760
    %v1075 = vsub.f32 %v1073, %v1074
    %v1076 = vand.u32 %v1075, 4294901760
    %1077 = vmatpush1.msra.mxu0 %v1076
    %1078 = vmatprep.subr.mxu0 0.0
    %1079 = vmatpush1.msra.mxu0 0.0
    %1080 = vmatprep.subr.mxu0 0.0
    %1081 = vmatpush1.msra.mxu0 0.0
    %1082 = vmatprep.subr.mxu0 0.0
    %1083 = vmatpush1.msra.mxu0 0.0
    %1084 = vmatprep.subr.mxu0 0.0
    %1085 = vmatpush1.msra.mxu0 0.0
    %1086 = vmatprep.subr.mxu0 0.0
    %1087 = vmatpush1.msra.mxu0 0.0
    %1088 = vmatprep.subr.mxu0 0.0
    %1089 = vmatpush1.msra.mxu0 0.0
    %1090 = vmatprep.subr.mxu0 0.0
    %1091 = vmatpush1.msra.mxu0 0.0
    %1092 = vmatprep.subr.mxu0 0.0
    %1093 = vmatpush1.msra.mxu0 0.0
    %1094 = vmatprep.subr.mxu0 0.0
    %1095 = vmatpush1.msra.mxu0 0.0
    %1096 = vmatprep.subr.mxu0 0.0
    %1097 = vmatpush1.msra.mxu0 0.0
    %1098 = vmatprep.subr.mxu0 0.0
    %1099 = vmatpush1.msra.mxu0 0.0
    %1100 = vmatprep.subr.mxu0 0.0
    %1101 = vmatpush1.msra.mxu0 0.0
    %1102 = vmatprep.subr.mxu0 0.0
    %1103 = vmatpush1.msra.mxu0 0.0
    %1104 = vmatprep.subr.mxu0 0.0
    %1105 = vmatpush1.msra.mxu0 0.0
    %1106 = vmatprep.subr.mxu0 0.0
    %1107 = vmatpush1.msra.mxu0 0.0
    %1108 = vmatprep.subr.mxu0 0.0
    %1109 = vmatpush1.msra.mxu0 0.0
    %1110 = vmatprep.subr.mxu0 0.0
    %1111 = vmatpush1.msra.mxu0 0.0
    %1112 = vmatprep.subr.mxu0 0.0
    %1113 = vmatpush1.msra.mxu0 0.0
    %1114 = vmatprep.subr.mxu0 0.0
    %1115 = vmatpush1.msra.mxu0 0.0
    %1116 = vmatprep.subr.mxu0 0.0
    %1117 = vmatpush1.msra.mxu0 0.0
    %1118 = vmatprep.subr.mxu0 0.0
    %1119 = vmatpush1.msra.mxu0 0.0
    %1120 = vmatprep.subr.mxu0 0.0
    %1121 = vmatpush1.msra.mxu0 0.0
    %1122 = vmatprep.subr.mxu0 0.0
    %1123 = vmatpush1.msra.mxu0 0.0
    %1124 = vmatprep.subr.mxu0 0.0
    %1125 = vmatpush1.msra.mxu0 0.0
    %1126 = vmatprep.mubr.f32.mxu0 0.0
    %v1127 = vand.u32 %v75, 4294901760
    %1128 = vmatmul.mubr.f32.gmra.mrb[0].mxu0 %v1127
    %v1129 = vpop.f32.mrb[0].mxu0
    %v1130 = vadd.f32 %v1019, %v1129
    %v1131 = vpop.f32.mrb[0].mxu0
    %1132 = vdwg.mxu0
    %1133 = vmatprep.subr.mxu0 0.0
    %v1134 = vand.u32 %v58, 4294901760
    %v1135 = vsub.f32 %v58, %v1134
    %1136 = vmatpush1.msra.mxu0 %v1135
    %1137 = vmatprep.subr.mxu0 0.0
    %v1138 = vand.u32 %v59, 4294901760
    %v1139 = vsub.f32 %v59, %v1138
    %1140 = vmatpush1.msra.mxu0 %v1139
    %1141 = vmatprep.subr.mxu0 0.0
    %v1142 = vand.u32 %v60, 4294901760
    %v1143 = vsub.f32 %v60, %v1142
    %1144 = vmatpush1.msra.mxu0 %v1143
    %1145 = vmatprep.subr.mxu0 0.0
    %v1146 = vand.u32 %v61, 4294901760
    %v1147 = vsub.f32 %v61, %v1146
    %1148 = vmatpush1.msra.mxu0 %v1147
    %1149 = vmatprep.subr.mxu0 0.0
    %v1150 = vand.u32 %v62, 4294901760
    %v1151 = vsub.f32 %v62, %v1150
    %1152 = vmatpush1.msra.mxu0 %v1151
    %1153 = vmatprep.subr.mxu0 0.0
    %v1154 = vand.u32 %v63, 4294901760
    %v1155 = vsub.f32 %v63, %v1154
    %1156 = vmatpush1.msra.mxu0 %v1155
    %1157 = vmatprep.subr.mxu0 0.0
    %v1158 = vand.u32 %v64, 4294901760
    %v1159 = vsub.f32 %v64, %v1158
    %1160 = vmatpush1.msra.mxu0 %v1159
    %1161 = vmatprep.subr.mxu0 0.0
    %v1162 = vand.u32 %v65, 4294901760
    %v1163 = vsub.f32 %v65, %v1162
    %1164 = vmatpush1.msra.mxu0 %v1163
    %1165 = vmatprep.subr.mxu0 0.0
    %1166 = vmatpush1.msra.mxu0 0.0
    %1167 = vmatprep.subr.mxu0 0.0
    %1168 = vmatpush1.msra.mxu0 0.0
    %1169 = vmatprep.subr.mxu0 0.0
    %1170 = vmatpush1.msra.mxu0 0.0
    %1171 = vmatprep.subr.mxu0 0.0
    %1172 = vmatpush1.msra.mxu0 0.0
    %1173 = vmatprep.subr.mxu0 0.0
    %1174 = vmatpush1.msra.mxu0 0.0
    %1175 = vmatprep.subr.mxu0 0.0
    %1176 = vmatpush1.msra.mxu0 0.0
    %1177 = vmatprep.subr.mxu0 0.0
    %1178 = vmatpush1.msra.mxu0 0.0
    %1179 = vmatprep.subr.mxu0 0.0
    %1180 = vmatpush1.msra.mxu0 0.0
    %1181 = vmatprep.subr.mxu0 0.0
    %1182 = vmatpush1.msra.mxu0 0.0
    %1183 = vmatprep.subr.mxu0 0.0
    %1184 = vmatpush1.msra.mxu0 0.0
    %1185 = vmatprep.subr.mxu0 0.0
    %1186 = vmatpush1.msra.mxu0 0.0
    %1187 = vmatprep.subr.mxu0 0.0
    %1188 = vmatpush1.msra.mxu0 0.0
    %1189 = vmatprep.subr.mxu0 0.0
    %1190 = vmatpush1.msra.mxu0 0.0
    %1191 = vmatprep.subr.mxu0 0.0
    %1192 = vmatpush1.msra.mxu0 0.0
    %1193 = vmatprep.subr.mxu0 0.0
    %1194 = vmatpush1.msra.mxu0 0.0
    %1195 = vmatprep.subr.mxu0 0.0
    %1196 = vmatpush1.msra.mxu0 0.0
    %1197 = vmatprep.subr.mxu0 0.0
    %1198 = vmatpush1.msra.mxu0 0.0
    %1199 = vmatprep.subr.mxu0 0.0
    %1200 = vmatpush1.msra.mxu0 0.0
    %1201 = vmatprep.subr.mxu0 0.0
    %1202 = vmatpush1.msra.mxu0 0.0
    %1203 = vmatprep.subr.mxu0 0.0
    %1204 = vmatpush1.msra.mxu0 0.0
    %1205 = vmatprep.subr.mxu0 0.0
    %1206 = vmatpush1.msra.mxu0 0.0
    %1207 = vmatprep.subr.mxu0 0.0
    %1208 = vmatpush1.msra.mxu0 0.0
    %1209 = vmatprep.subr.mxu0 0.0
    %1210 = vmatpush1.msra.mxu0 0.0
    %1211 = vmatprep.subr.mxu0 0.0
    %1212 = vmatpush1.msra.mxu0 0.0
    %1213 = vmatprep.mubr.f32.mxu0 0.0
    %v1214 = vand.u32 %v75, 4294901760
    %v1215 = vsub.f32 %v75, %v1214
    %1216 = vmatmul.mubr.f32.gmra.mrb[0].mxu0 %v1215
    %v1217 = vpop.f32.mrb[0].mxu0
    %v1218 = vadd.f32 %v1130, %v1217
    %v1219 = vpop.f32.mrb[0].mxu0
    %1220 = vdwg.mxu0
    %1221 = vmatprep.subr.mxu0 0.0
    %v1222 = vand.u32 %v58, 4294901760
    %1223 = vmatpush1.msra.mxu0 %v1222
    %1224 = vmatprep.subr.mxu0 0.0
    %v1225 = vand.u32 %v59, 4294901760
    %1226 = vmatpush1.msra.mxu0 %v1225
    %1227 = vmatprep.subr.mxu0 0.0
    %v1228 = vand.u32 %v60, 4294901760
    %1229 = vmatpush1.msra.mxu0 %v1228
    %1230 = vmatprep.subr.mxu0 0.0
    %v1231 = vand.u32 %v61, 4294901760
    %1232 = vmatpush1.msra.mxu0 %v1231
    %1233 = vmatprep.subr.mxu0 0.0
    %v1234 = vand.u32 %v62, 4294901760
    %1235 = vmatpush1.msra.mxu0 %v1234
    %1236 = vmatprep.subr.mxu0 0.0
    %v1237 = vand.u32 %v63, 4294901760
    %1238 = vmatpush1.msra.mxu0 %v1237
    %1239 = vmatprep.subr.mxu0 0.0
    %v1240 = vand.u32 %v64, 4294901760
    %1241 = vmatpush1.msra.mxu0 %v1240
    %1242 = vmatprep.subr.mxu0 0.0
    %v1243 = vand.u32 %v65, 4294901760
    %1244 = vmatpush1.msra.mxu0 %v1243
    %1245 = vmatprep.subr.mxu0 0.0
    %1246 = vmatpush1.msra.mxu0 0.0
    %1247 = vmatprep.subr.mxu0 0.0
    %1248 = vmatpush1.msra.mxu0 0.0
    %1249 = vmatprep.subr.mxu0 0.0
    %1250 = vmatpush1.msra.mxu0 0.0
    %1251 = vmatprep.subr.mxu0 0.0
    %1252 = vmatpush1.msra.mxu0 0.0
    %1253 = vmatprep.subr.mxu0 0.0
    %1254 = vmatpush1.msra.mxu0 0.0
    %1255 = vmatprep.subr.mxu0 0.0
    %1256 = vmatpush1.msra.mxu0 0.0
    %1257 = vmatprep.subr.mxu0 0.0
    %1258 = vmatpush1.msra.mxu0 0.0
    %1259 = vmatprep.subr.mxu0 0.0
    %1260 = vmatpush1.msra.mxu0 0.0
    %1261 = vmatprep.subr.mxu0 0.0
    %1262 = vmatpush1.msra.mxu0 0.0
    %1263 = vmatprep.subr.mxu0 0.0
    %1264 = vmatpush1.msra.mxu0 0.0
    %1265 = vmatprep.subr.mxu0 0.0
    %1266 = vmatpush1.msra.mxu0 0.0
    %1267 = vmatprep.subr.mxu0 0.0
    %1268 = vmatpush1.msra.mxu0 0.0
    %1269 = vmatprep.subr.mxu0 0.0
    %1270 = vmatpush1.msra.mxu0 0.0
    %1271 = vmatprep.subr.mxu0 0.0
    %1272 = vmatpush1.msra.mxu0 0.0
    %1273 = vmatprep.subr.mxu0 0.0
    %1274 = vmatpush1.msra.mxu0 0.0
    %1275 = vmatprep.subr.mxu0 0.0
    %1276 = vmatpush1.msra.mxu0 0.0
    %1277 = vmatprep.subr.mxu0 0.0
    %1278 = vmatpush1.msra.mxu0 0.0
    %1279 = vmatprep.subr.mxu0 0.0
    %1280 = vmatpush1.msra.mxu0 0.0
    %1281 = vmatprep.subr.mxu0 0.0
    %1282 = vmatpush1.msra.mxu0 0.0
    %1283 = vmatprep.subr.mxu0 0.0
    %1284 = vmatpush1.msra.mxu0 0.0
    %1285 = vmatprep.subr.mxu0 0.0
    %1286 = vmatpush1.msra.mxu0 0.0
    %1287 = vmatprep.subr.mxu0 0.0
    %1288 = vmatpush1.msra.mxu0 0.0
    %1289 = vmatprep.subr.mxu0 0.0
    %1290 = vmatpush1.msra.mxu0 0.0
    %1291 = vmatprep.subr.mxu0 0.0
    %1292 = vmatpush1.msra.mxu0 0.0
    %1293 = vmatprep.mubr.f32.mxu0 0.0
    %v1294 = vand.u32 %v75, 4294901760
    %v1295 = vsub.f32 %v75, %v1294
    %v1296 = vand.u32 %v1295, 4294901760
    %1297 = vmatmul.mubr.f32.gmra.mrb[0].mxu0 %v1296
    %v1298 = vpop.f32.mrb[0].mxu0
    %v1299 = vadd.f32 %v1218, %v1298
    %v1300 = vpop.f32.mrb[0].mxu0
    %1301 = vdwg.mxu0
    %1302 = vmatprep.subr.mxu0 0.0
    %v1303 = vand.u32 %v58, 4294901760
    %v1304 = vsub.f32 %v58, %v1303
    %v1305 = vand.u32 %v1304, 4294901760
    %1306 = vmatpush1.msra.mxu0 %v1305
    %1307 = vmatprep.subr.mxu0 0.0
    %v1308 = vand.u32 %v59, 4294901760
    %v1309 = vsub.f32 %v59, %v1308
    %v1310 = vand.u32 %v1309, 4294901760
    %1311 = vmatpush1.msra.mxu0 %v1310
    %1312 = vmatprep.subr.mxu0 0.0
    %v1313 = vand.u32 %v60, 4294901760
    %v1314 = vsub.f32 %v60, %v1313
    %v1315 = vand.u32 %v1314, 4294901760
    %1316 = vmatpush1.msra.mxu0 %v1315
    %1317 = vmatprep.subr.mxu0 0.0
    %v1318 = vand.u32 %v61, 4294901760
    %v1319 = vsub.f32 %v61, %v1318
    %v1320 = vand.u32 %v1319, 4294901760
    %1321 = vmatpush1.msra.mxu0 %v1320
    %1322 = vmatprep.subr.mxu0 0.0
    %v1323 = vand.u32 %v62, 4294901760
    %v1324 = vsub.f32 %v62, %v1323
    %v1325 = vand.u32 %v1324, 4294901760
    %1326 = vmatpush1.msra.mxu0 %v1325
    %1327 = vmatprep.subr.mxu0 0.0
    %v1328 = vand.u32 %v63, 4294901760
    %v1329 = vsub.f32 %v63, %v1328
    %v1330 = vand.u32 %v1329, 4294901760
    %1331 = vmatpush1.msra.mxu0 %v1330
    %1332 = vmatprep.subr.mxu0 0.0
    %v1333 = vand.u32 %v64, 4294901760
    %v1334 = vsub.f32 %v64, %v1333
    %v1335 = vand.u32 %v1334, 4294901760
    %1336 = vmatpush1.msra.mxu0 %v1335
    %1337 = vmatprep.subr.mxu0 0.0
    %v1338 = vand.u32 %v65, 4294901760
    %v1339 = vsub.f32 %v65, %v1338
    %v1340 = vand.u32 %v1339, 4294901760
    %1341 = vmatpush1.msra.mxu0 %v1340
    %1342 = vmatprep.subr.mxu0 0.0
    %1343 = vmatpush1.msra.mxu0 0.0
    %1344 = vmatprep.subr.mxu0 0.0
    %1345 = vmatpush1.msra.mxu0 0.0
    %1346 = vmatprep.subr.mxu0 0.0
    %1347 = vmatpush1.msra.mxu0 0.0
    %1348 = vmatprep.subr.mxu0 0.0
    %1349 = vmatpush1.msra.mxu0 0.0
    %1350 = vmatprep.subr.mxu0 0.0
    %1351 = vmatpush1.msra.mxu0 0.0
    %1352 = vmatprep.subr.mxu0 0.0
    %1353 = vmatpush1.msra.mxu0 0.0
    %1354 = vmatprep.subr.mxu0 0.0
    %1355 = vmatpush1.msra.mxu0 0.0
    %1356 = vmatprep.subr.mxu0 0.0
    %1357 = vmatpush1.msra.mxu0 0.0
    %1358 = vmatprep.subr.mxu0 0.0
    %1359 = vmatpush1.msra.mxu0 0.0
    %1360 = vmatprep.subr.mxu0 0.0
    %1361 = vmatpush1.msra.mxu0 0.0
    %1362 = vmatprep.subr.mxu0 0.0
    %1363 = vmatpush1.msra.mxu0 0.0
    %1364 = vmatprep.subr.mxu0 0.0
    %1365 = vmatpush1.msra.mxu0 0.0
    %1366 = vmatprep.subr.mxu0 0.0
    %1367 = vmatpush1.msra.mxu0 0.0
    %1368 = vmatprep.subr.mxu0 0.0
    %1369 = vmatpush1.msra.mxu0 0.0
    %1370 = vmatprep.subr.mxu0 0.0
    %1371 = vmatpush1.msra.mxu0 0.0
    %1372 = vmatprep.subr.mxu0 0.0
    %1373 = vmatpush1.msra.mxu0 0.0
    %1374 = vmatprep.subr.mxu0 0.0
    %1375 = vmatpush1.msra.mxu0 0.0
    %1376 = vmatprep.subr.mxu0 0.0
    %1377 = vmatpush1.msra.mxu0 0.0
    %1378 = vmatprep.subr.mxu0 0.0
    %1379 = vmatpush1.msra.mxu0 0.0
    %1380 = vmatprep.subr.mxu0 0.0
    %1381 = vmatpush1.msra.mxu0 0.0
    %1382 = vmatprep.subr.mxu0 0.0
    %1383 = vmatpush1.msra.mxu0 0.0
    %1384 = vmatprep.subr.mxu0 0.0
    %1385 = vmatpush1.msra.mxu0 0.0
    %1386 = vmatprep.subr.mxu0 0.0
    %1387 = vmatpush1.msra.mxu0 0.0
    %1388 = vmatprep.subr.mxu0 0.0
    %1389 = vmatpush1.msra.mxu0 0.0
    %1390 = vmatprep.mubr.f32.mxu0 0.0
    %v1391 = vand.u32 %v75, 4294901760
    %1392 = vmatmul.mubr.f32.gmra.mrb[0].mxu0 %v1391
    %v1393 = vpop.f32.mrb[0].mxu0
    %v1394 = vadd.f32 %v1299, %v1393
    %v1395 = vpop.f32.mrb[0].mxu0
    %1396 = vdwg.mxu0
    %1397 = vmatprep.subr.mxu0 0.0
    %v1398 = vand.u32 %v58, 4294901760
    %1399 = vmatpush1.msra.mxu0 %v1398
    %1400 = vmatprep.subr.mxu0 0.0
    %v1401 = vand.u32 %v59, 4294901760
    %1402 = vmatpush1.msra.mxu0 %v1401
    %1403 = vmatprep.subr.mxu0 0.0
    %v1404 = vand.u32 %v60, 4294901760
    %1405 = vmatpush1.msra.mxu0 %v1404
    %1406 = vmatprep.subr.mxu0 0.0
    %v1407 = vand.u32 %v61, 4294901760
    %1408 = vmatpush1.msra.mxu0 %v1407
    %1409 = vmatprep.subr.mxu0 0.0
    %v1410 = vand.u32 %v62, 4294901760
    %1411 = vmatpush1.msra.mxu0 %v1410
    %1412 = vmatprep.subr.mxu0 0.0
    %v1413 = vand.u32 %v63, 4294901760
    %1414 = vmatpush1.msra.mxu0 %v1413
    %1415 = vmatprep.subr.mxu0 0.0
    %v1416 = vand.u32 %v64, 4294901760
    %1417 = vmatpush1.msra.mxu0 %v1416
    %1418 = vmatprep.subr.mxu0 0.0
    %v1419 = vand.u32 %v65, 4294901760
    %1420 = vmatpush1.msra.mxu0 %v1419
    %1421 = vmatprep.subr.mxu0 0.0
    %1422 = vmatpush1.msra.mxu0 0.0
    %1423 = vmatprep.subr.mxu0 0.0
    %1424 = vmatpush1.msra.mxu0 0.0
    %1425 = vmatprep.subr.mxu0 0.0
    %1426 = vmatpush1.msra.mxu0 0.0
    %1427 = vmatprep.subr.mxu0 0.0
    %1428 = vmatpush1.msra.mxu0 0.0
    %1429 = vmatprep.subr.mxu0 0.0
    %1430 = vmatpush1.msra.mxu0 0.0
    %1431 = vmatprep.subr.mxu0 0.0
    %1432 = vmatpush1.msra.mxu0 0.0
    %1433 = vmatprep.subr.mxu0 0.0
    %1434 = vmatpush1.msra.mxu0 0.0
    %1435 = vmatprep.subr.mxu0 0.0
    %1436 = vmatpush1.msra.mxu0 0.0
    %1437 = vmatprep.subr.mxu0 0.0
    %1438 = vmatpush1.msra.mxu0 0.0
    %1439 = vmatprep.subr.mxu0 0.0
    %1440 = vmatpush1.msra.mxu0 0.0
    %1441 = vmatprep.subr.mxu0 0.0
    %1442 = vmatpush1.msra.mxu0 0.0
    %1443 = vmatprep.subr.mxu0 0.0
    %1444 = vmatpush1.msra.mxu0 0.0
    %1445 = vmatprep.subr.mxu0 0.0
    %1446 = vmatpush1.msra.mxu0 0.0
    %1447 = vmatprep.subr.mxu0 0.0
    %1448 = vmatpush1.msra.mxu0 0.0
    %1449 = vmatprep.subr.mxu0 0.0
    %1450 = vmatpush1.msra.mxu0 0.0
    %1451 = vmatprep.subr.mxu0 0.0
    %1452 = vmatpush1.msra.mxu0 0.0
    %1453 = vmatprep.subr.mxu0 0.0
    %1454 = vmatpush1.msra.mxu0 0.0
    %1455 = vmatprep.subr.mxu0 0.0
    %1456 = vmatpush1.msra.mxu0 0.0
    %1457 = vmatprep.subr.mxu0 0.0
    %1458 = vmatpush1.msra.mxu0 0.0
    %1459 = vmatprep.subr.mxu0 0.0
    %1460 = vmatpush1.msra.mxu0 0.0
    %1461 = vmatprep.subr.mxu0 0.0
    %1462 = vmatpush1.msra.mxu0 0.0
    %1463 = vmatprep.subr.mxu0 0.0
    %1464 = vmatpush1.msra.mxu0 0.0
    %1465 = vmatprep.subr.mxu0 0.0
    %1466 = vmatpush1.msra.mxu0 0.0
    %1467 = vmatprep.subr.mxu0 0.0
    %1468 = vmatpush1.msra.mxu0 0.0
    %1469 = vmatprep.mubr.f32.mxu0 0.0
    %v1470 = vand.u32 %v75, 4294901760
    %1471 = vmatmul.mubr.f32.gmra.mrb[0].mxu0 %v1470
    %v1472 = vpop.f32.mrb[0].mxu0
    %v1473 = vadd.f32 %v1394, %v1472
    %v1474 = vpop.f32.mrb[0].mxu0
    %1475 = vdwg.mxu0
    %v1476 = vmax.f32 %v1473, 0.0
    %v1477 = vld [vmem:[%s3] sm:$0x1]
    %v1479 = vlaneseq
    %v1480 = vshrl.u32 %v1479, 7
    %v1481 = vsub.s32 0, %v1480
    %v1482 = vrot.slane %v1477, %v1481
    %v1484 = vmul.f32 %v1476, %v1482
    %vm1485 = vcmask 408576
    %v1486 = vsel %vm1485, %v1484, 0.0
    %1487 = vadd.xlane.f32.xlu0 %v1486
    %v1488 = vpop.xlane.xlu0 %1487
    %v1489 = vld [vmem:[#allocation2] sm:$0x1]
    %1491 = vset.pattern.permute.xlu0 0
    %1492 = vperm.xlu0 %1491, %v1489
    %v1493 = vpop.permute.xlu0 %1492
    %v1495 = vlaneseq
    %v1496 = vshrl.u32 %v1495, 7
    %v1497 = vsub.s32 0, %v1496
    %v1498 = vrot.slane %v1493, %v1497
    %v1499 = vadd.f32 %v1488, %v1498
    %v1500 = vxor.u32 %v1499, 2147483648
    %v1501 = vmul.f32 %v1500, 1.442695
    %v1502 = vpow.pop %v1501
    %v1503 = vadd.f32 %v1502, 1.0
    %v1504 = vrcp.pop %v1503
    %v1505 = vmul.f32 1.0, %v1504
    %v1507 = vlaneseq
    %v1508 = vand.u32 %v1507, 127
    %v1509 = vlaneseq
    %v1510 = vshrl.u32 %v1509, 7
    %v1511 = vsub.s32 %v1508, %v1510
    %v1512 = vrot.slane %v1505, %v1511
    %vm1514 = vcmask 57344
    %1515 = vst.msk [vmem:[#allocation3] sm:$0x1] %vm1514, %v1512
    // Predicated region
    $region22: #{tpu_custom_call.1} parent=1 // pred_check
      _
    $region23: #{tpu_custom_call.1} parent=1 // pred_check_branch
      %1517 = sbr.rel (0) target = $region25
    $region24: #{tpu_custom_call.1} parent=1 // pred_region
      %s1519 = ssub.s32 16, 16
      %1520 = vsyncadd [#allocation4], %s1519
      %s1522 = sshll.u32 [#allocation3], 4
      %s1523 = int_to_ptr.vmem [resolvable:$true] %s1522
      %1525 = dma.vmem_to_hbm [thread:$0]  %s1523, 16, %s5, [#allocation4]
    $region25: #{tpu_custom_call.1} parent=1 // pred_fallthru
      _
    // Predicated region
    $region26: #{tpu_custom_call.1} parent=1 // pred_check
      _
    $region27: #{tpu_custom_call.1} parent=1 // pred_check_branch
      %1527 = sbr.rel (0) target = $region29
    $region28: #{tpu_custom_call.1} parent=1 // pred_region
      %1528 = dma.done [#allocation4], 16
    $region29: #{tpu_custom_call.1} parent=1 // pred_fallthru
      _
    %1529 = vsyncpa [#allocation4], 1

</llo_original>
